<compile_context>
chip_gen: v7x
topology: tpu7x:2x2x1
jax: 0.10.0
libtpu: 0.0.40
codegen_flags: <defaults>
</compile_context>

<pallas_src>
import functools

import jax
import jax.numpy as jnp
from jax import lax
from jax.experimental import pallas as pl
from jax.experimental.pallas import tpu as pltpu


# ----------------------------------------------------------------------------
# In-kernel helpers
# ----------------------------------------------------------------------------
def _layernorm(v, g, b, eps=1e-5):
    """f32 LayerNorm over the last dim; g/b are (1, D)."""
    mu = jnp.mean(v, axis=-1, keepdims=True)
    var = jnp.mean((v - mu) ** 2, axis=-1, keepdims=True)
    return (v - mu) * lax.rsqrt(var + eps) * g + b


# ----------------------------------------------------------------------------
# Fully fused transformer kernel: grid = (row_blocks, n_layers)
# ----------------------------------------------------------------------------
def fused_transformer_kernel(x_ref,
                             ln1_g_ref, ln1_b_ref,
                             w_qkv_ref, b_qkv_ref, w_o_ref, b_o_ref,
                             ln2_g_ref, ln2_b_ref,
                             w1_ref, b1_ref, w2_ref, b2_ref,
                             lnf_g_ref, lnf_b_ref, w_u_ref, b_u_ref,
                             logits_ref,
                             resid_ref,
                             *, seq_len, n_heads, d_head):
    layer = pl.program_id(1)
    n_layers = pl.num_programs(1)
    S, H, dh = seq_len, n_heads, d_head
    Hdh = H * dh

    # Load the residual stream from HBM only once per row block (layer 0);
    # afterwards it stays resident in VMEM scratch across the layer axis.
    @pl.when(layer == 0)
    def _():
        resid_ref[...] = x_ref[...]

    x = resid_ref[...]                                    # (Rb, D) f32
    Rb = x.shape[0]
    nb = Rb // S                                          # sequences in this block

    # --- LayerNorm 1 (f32 statistics) ---
    ln1 = _layernorm(x, ln1_g_ref[0], ln1_b_ref[0])

    # --- fused QKV projection: one wide (Rb, D) @ (D, 3*H*dh) MXU matmul ---
    # 1/sqrt(d_head) is pre-folded into the Q columns / Q bias at the wrapper.
    qkv = jnp.dot(ln1.astype(jnp.bfloat16), w_qkv_ref[0],
                  preferred_element_type=jnp.float32) + b_qkv_ref[0]
    q = qkv[:, 0 * Hdh:1 * Hdh].reshape(nb, S, Hdh)       # leading-dim split only
    k = qkv[:, 1 * Hdh:2 * Hdh].reshape(nb, S, Hdh)
    v = qkv[:, 2 * Hdh:3 * Hdh].reshape(nb, S, Hdh)

    # causal mask, built once on (S, S), broadcast over the nb sequences
    row_i = lax.broadcasted_iota(jnp.int32, (S, S), 0)
    col_i = lax.broadcasted_iota(jnp.int32, (S, S), 1)
    causal = (col_i > row_i)[None]                        # (1, S, S)

    # --- attention core ---
    # Per-head loop (H unrolled steps), batched over the nb sequences via a
    # single-batch-dim einsum.  The per-head output is folded straight into
    # the output projection through a sublane-aligned W_O row slice, so no
    # lane concatenation / Z re-packing is ever materialized.
    w_o = w_o_ref[0]                                      # (Hdh, D) bf16
    attn_out = jnp.zeros_like(x)                          # (Rb, D) f32
    for h in range(H):
        c0 = h * dh
        qh = q[:, :, c0:c0 + dh].astype(jnp.bfloat16)     # (nb, S, dh)
        kh = k[:, :, c0:c0 + dh].astype(jnp.bfloat16)
        vh = v[:, :, c0:c0 + dh].astype(jnp.bfloat16)
        s = jnp.einsum('bqd,bkd->bqk', qh, kh,
                       preferred_element_type=jnp.float32)          # (nb, S, S)
        s = jnp.where(causal, jnp.float32(-100000.0), s)
        p = jax.nn.softmax(s, axis=-1)                               # f32
        zh = jnp.einsum('bqk,bkd->bqd', p.astype(jnp.bfloat16), vh,
                        preferred_element_type=jnp.float32)          # (nb, S, dh)
        zh2d = zh.reshape(Rb, dh).astype(jnp.bfloat16)
        attn_out = attn_out + jnp.dot(zh2d, w_o[c0:c0 + dh, :],
                                      preferred_element_type=jnp.float32)
    attn_out = attn_out + b_o_ref[0]
    resid_mid = x + attn_out

    # --- LayerNorm 2 + MLP (full-width matmuls, ReLU) ---
    ln2 = _layernorm(resid_mid, ln2_g_ref[0], ln2_b_ref[0])
    h1 = jnp.dot(ln2.astype(jnp.bfloat16), w1_ref[0],
                 preferred_element_type=jnp.float32) + b1_ref[0]
    h1 = jnp.maximum(h1, 0.0)
    mlp_out = jnp.dot(h1.astype(jnp.bfloat16), w2_ref[0],
                      preferred_element_type=jnp.float32) + b2_ref[0]
    new_resid = resid_mid + mlp_out
    resid_ref[...] = new_resid

    # --- final LayerNorm + unembed, fused into the last layer step ---
    @pl.when(layer == n_layers - 1)
    def _():
        lnf = _layernorm(new_resid, lnf_g_ref[...], lnf_b_ref[...])
        logits_ref[...] = jnp.dot(lnf.astype(jnp.bfloat16), w_u_ref[...],
                                  preferred_element_type=jnp.float32) + b_u_ref[...]


# ----------------------------------------------------------------------------
# Weight fusion (done ONCE, outside the forward path)
# ----------------------------------------------------------------------------
def fuse_block_params(p):
    """Fold the per-head PyTorch-layout weights into wide, MXU-friendly mats."""
    H, D, dh = p['W_Q'].shape
    Hdh = H * dh
    scale = 1.0 / (float(dh) ** 0.5)

    def head_major(w):                       # (H, D, dh) -> (D, H*dh)
        return jnp.transpose(w, (1, 0, 2)).reshape(D, Hdh)

    w_qkv = jnp.concatenate(
        [head_major(p['W_Q']) * scale,       # fold 1/sqrt(dh) into Q columns
         head_major(p['W_K']),
         head_major(p['W_V'])], axis=1).astype(jnp.bfloat16)         # (D, 3*Hdh)
    b_qkv = jnp.concatenate(
        [p['b_Q'].reshape(1, Hdh) * scale,
         p['b_K'].reshape(1, Hdh),
         p['b_V'].reshape(1, Hdh)], axis=1)                          # f32 (1, 3*Hdh)
    w_o = p['W_O'].reshape(Hdh, D).astype(jnp.bfloat16)              # (Hdh, D)

    return {
        'ln1_g': p['ln1_g'], 'ln1_b': p['ln1_b'],
        'w_qkv': w_qkv, 'b_qkv': b_qkv,
        'w_o': w_o, 'b_o': p['b_O'],
        'ln2_g': p['ln2_g'], 'ln2_b': p['ln2_b'],
        'w1': p['W1'].astype(jnp.bfloat16), 'b1': p['b1'],
        'w2': p['W2'].astype(jnp.bfloat16), 'b2': p['b2'],
    }


def fuse_transformer_params(params):
    """Precompute all kernel-ready weights; stack layers on a leading axis."""
    blocks = [fuse_block_params(bp) for bp in params['blocks']]
    fused = {k: jnp.stack([b[k] for b in blocks], axis=0) for k in blocks[0]}
    fused.update({
        'W_E': params['W_E'],
        'W_pos': params['W_pos'],
        'lnf_g': params['lnf_g'], 'lnf_b': params['lnf_b'],
        'w_u': params['W_U'].astype(jnp.bfloat16),
        'b_u': params['b_U'],
    })
    return fused


_LAYER_ORDER = ['ln1_g', 'ln1_b', 'w_qkv', 'b_qkv', 'w_o', 'b_o',
                'ln2_g', 'ln2_b', 'w1', 'b1', 'w2', 'b2']


# ----------------------------------------------------------------------------
# Wrapper: one pallas_call for the whole stack + unembed
# ----------------------------------------------------------------------------
def _pick_row_block(rows, seq_len):
    """Whole slab when small; else a sequence-aligned, 8-aligned chunk."""
    if rows <= 512:
        return rows
    n_seq = rows // seq_len
    for c in range(n_seq, 0, -1):
        blk = c * seq_len
        if blk <= 512 and rows % blk == 0 and blk % 8 == 0:
            return blk
    return rows


def fused_transformer_apply(x, fp, n_heads, d_head):
    """x: (B, S, D) f32 residual after embeddings. fp: fuse_transformer_params."""
    B, S, D = x.shape
    rows = B * S
    V = fp['w_u'].shape[-1]
    L = fp['w_qkv'].shape[0]
    x2d = x.reshape(rows, D)

    Rb = _pick_row_block(rows, S)
    num_row_blocks = rows // Rb

    layer_arrays = [fp[k] for k in _LAYER_ORDER]
    final_arrays = [fp['lnf_g'], fp['lnf_b'], fp['w_u'], fp['b_u']]

    def stacked_spec(a):
        # select this layer's slice of the stacked weight
        return pl.BlockSpec((1,) + a.shape[1:],
                            lambda i, l, n=a.ndim: (l,) + (0,) * (n - 1))

    def const_spec(a):
        # fetched once (constant block index across the whole grid)
        return pl.BlockSpec(a.shape, lambda i, l, n=a.ndim: (0,) * n)

    in_specs = [pl.BlockSpec((Rb, D), lambda i, l: (i, 0))]
    in_specs += [stacked_spec(a) for a in layer_arrays]
    in_specs += [const_spec(a) for a in final_arrays]

    kernel = functools.partial(fused_transformer_kernel, seq_len=S,
                               n_heads=n_heads, d_head=d_head)

    logits2d = pl.pallas_call(
        kernel,
        out_shape=jax.ShapeDtypeStruct((rows, V), jnp.float32),
        grid_spec=pltpu.PrefetchScalarGridSpec(
            num_scalar_prefetch=0,
            grid=(num_row_blocks, L),
            in_specs=in_specs,
            out_specs=pl.BlockSpec((Rb, V), lambda i, l: (i, 0)),
            scratch_shapes=[pltpu.VMEM((Rb, D), jnp.float32)]),
        compiler_params=pltpu.CompilerParams(
            dimension_semantics=("parallel", "arbitrary"),
            vmem_limit_bytes=32 * 1024 * 1024),
    )(x2d, *layer_arrays, *final_arrays)
    return logits2d.reshape(B, S, V)


@functools.partial(jax.jit, static_argnames=('n_heads', 'd_head'))
def transformer_forward(tokens, fused, n_heads, d_head):
    """tokens: (B, S) int32 -> logits (B, S, d_vocab) f32."""
    B, S = tokens.shape
    # TODO(synk): embedding gather kept in plain JAX (no useful Pallas kernel
    #             at these sizes).
    resid = jnp.take(fused['W_E'], tokens, axis=0) \
        + fused['W_pos'][:S][None, :, :]
    return fused_transformer_apply(resid, fused, n_heads, d_head)


# ----------------------------------------------------------------------------
# Parameter init (mirrors the PyTorch module; deterministic synthetic values)
# ----------------------------------------------------------------------------
def init_block_params(key, d_model, n_heads, d_head, d_mlp, init_range):
    ks = jax.random.split(key, 8)
    return {
        'W_Q': init_range * jax.random.normal(ks[0], (n_heads, d_model, d_head), jnp.float32),
        'W_K': init_range * jax.random.normal(ks[1], (n_heads, d_model, d_head), jnp.float32),
        'W_V': init_range * jax.random.normal(ks[2], (n_heads, d_model, d_head), jnp.float32),
        'W_O': init_range * jax.random.normal(ks[3], (n_heads, d_head, d_model), jnp.float32),
        'b_Q': jnp.zeros((n_heads, d_head), jnp.float32),
        'b_K': jnp.zeros((n_heads, d_head), jnp.float32),
        'b_V': jnp.zeros((n_heads, d_head), jnp.float32),
        'b_O': jnp.zeros((1, d_model), jnp.float32),
        'ln1_g': jnp.ones((1, d_model), jnp.float32),
        'ln1_b': jnp.zeros((1, d_model), jnp.float32),
        'ln2_g': jnp.ones((1, d_model), jnp.float32),
        'ln2_b': jnp.zeros((1, d_model), jnp.float32),
        'W1': 0.05 * jax.random.normal(ks[4], (d_model, d_mlp), jnp.float32),
        'b1': 0.01 * jax.random.normal(ks[5], (1, d_mlp), jnp.float32),
        'W2': 0.05 * jax.random.normal(ks[6], (d_mlp, d_model), jnp.float32),
        'b2': 0.01 * jax.random.normal(ks[7], (1, d_model), jnp.float32),
    }


def init_transformer_params(key, cfg):
    k_e, k_pos, k_u, k_blocks = jax.random.split(key, 4)
    block_keys = jax.random.split(k_blocks, cfg['n_blocks'])
    return {
        'W_E': jax.random.normal(k_e, (cfg['d_vocab'], cfg['d_model']), jnp.float32),
        'W_pos': cfg['init_range'] * jax.random.normal(
            k_pos, (cfg['n_ctx'], cfg['d_model']), jnp.float32),
        'blocks': [init_block_params(k, cfg['d_model'], cfg['n_heads'],
                                     cfg['d_head'], cfg['d_mlp'],
                                     cfg['init_range']) for k in block_keys],
        'lnf_g': jnp.ones((1, cfg['d_model']), jnp.float32),
        'lnf_b': jnp.zeros((1, cfg['d_model']), jnp.float32),
        'W_U': cfg['init_range'] * jax.random.normal(
            k_u, (cfg['d_model'], cfg['d_vocab']), jnp.float32),
        'b_U': jnp.zeros((1, cfg['d_vocab']), jnp.float32),
    }


# ----------------------------------------------------------------------------
# Pure-JAX f32 reference mirroring the PyTorch forward (eval mode)
# ----------------------------------------------------------------------------
def _ln_ref(v, g, b, eps=1e-5):
    mu = v.mean(-1, keepdims=True)
    var = ((v - mu) ** 2).mean(-1, keepdims=True)
    return (v - mu) / jnp.sqrt(var + eps) * g + b


def reference_block(x, p):
    ln1 = _ln_ref(x, p['ln1_g'], p['ln1_b'])
    Q = jnp.einsum('bsd,hdk->bshk', ln1, p['W_Q']) + p['b_Q']
    K = jnp.einsum('bsd,hdk->bshk', ln1, p['W_K']) + p['b_K']
    V = jnp.einsum('bsd,hdk->bshk', ln1, p['W_V']) + p['b_V']
    dh = p['W_Q'].shape[-1]
    scores = jnp.einsum('bqhd,bkhd->bhqk', Q, K) / jnp.sqrt(jnp.float32(dh))
    S = x.shape[1]
    mask = jnp.triu(jnp.ones((S, S), bool), 1)
    scores = jnp.where(mask, -100000.0, scores)
    attn = jax.nn.softmax(scores, axis=-1)
    Z = jnp.einsum('bkhd,bhqk->bqhd', V, attn)
    attn_out = jnp.einsum('bqhd,hdm->bqm', Z, p['W_O']) + p['b_O']
    resid_mid = x + attn_out
    ln2 = _ln_ref(resid_mid, p['ln2_g'], p['ln2_b'])
    h = jnp.maximum(ln2 @ p['W1'] + p['b1'], 0.0)
    return resid_mid + h @ p['W2'] + p['b2']


def reference_transformer(tokens, p):
    S = tokens.shape[1]
    resid = p['W_E'][tokens] + p['W_pos'][:S][None]
    for bp in p['blocks']:
        resid = reference_block(resid, bp)
    lnf = _ln_ref(resid, p['lnf_g'], p['lnf_b'])
    return lnf @ p['W_U'] + p['b_U']


# ----------------------------------------------------------------------------
if __name__ == "__main__":
    cfg = dict(d_vocab=128, n_ctx=8, d_model=32, n_heads=4, d_head=8,
               d_mlp=64, n_blocks=2, init_range=0.02)
    B, S = 2, 8

    key = jax.random.PRNGKey(0)
    k_tok, k_par = jax.random.split(key)
    tokens = jax.random.randint(k_tok, (B, S), 0, cfg['d_vocab'], dtype=jnp.int32)
    params = init_transformer_params(k_par, cfg)

    # Weight fusion hoisted out of the forward path (done once, reused).
    fused = fuse_transformer_params(params)

    logits = transformer_forward(tokens, fused, cfg['n_heads'], cfg['d_head'])
    logits = jax.block_until_ready(logits)

    ref = reference_transformer(tokens, params)
    assert logits.shape == (B, S, cfg['d_vocab'])
    max_diff = float(jnp.max(jnp.abs(logits - ref)))
    # bf16 MXU inputs with f32 accumulation vs. the pure-f32 reference.
    assert max_diff < 2e-2, f"max abs diff {max_diff}"

    print("KERNEL_OK")
</pallas_src>

<mosaic_0001>
module attributes {stable_mosaic.version = 11 : i64} {
  func.func @fused_transformer_kernel(%arg0: i32, %arg1: i32, %arg2: memref<16x32xf32, #tpu.memory_space<vmem>>, %arg3: memref<1x1x32xf32, #tpu.memory_space<vmem>>, %arg4: memref<1x1x32xf32, #tpu.memory_space<vmem>>, %arg5: memref<1x32x96xbf16, #tpu.memory_space<vmem>>, %arg6: memref<1x1x96xf32, #tpu.memory_space<vmem>>, %arg7: memref<1x32x32xbf16, #tpu.memory_space<vmem>>, %arg8: memref<1x1x32xf32, #tpu.memory_space<vmem>>, %arg9: memref<1x1x32xf32, #tpu.memory_space<vmem>>, %arg10: memref<1x1x32xf32, #tpu.memory_space<vmem>>, %arg11: memref<1x32x64xbf16, #tpu.memory_space<vmem>>, %arg12: memref<1x1x64xf32, #tpu.memory_space<vmem>>, %arg13: memref<1x64x32xbf16, #tpu.memory_space<vmem>>, %arg14: memref<1x1x32xf32, #tpu.memory_space<vmem>>, %arg15: memref<1x32xf32, #tpu.memory_space<vmem>>, %arg16: memref<1x32xf32, #tpu.memory_space<vmem>>, %arg17: memref<32x128xbf16, #tpu.memory_space<vmem>>, %arg18: memref<1x128xf32, #tpu.memory_space<vmem>>, %arg19: memref<16x128xf32, #tpu.memory_space<vmem>>, %arg20: memref<16x32xf32, #tpu.memory_space<vmem>>) attributes {dimension_semantics = [#tpu.dimension_semantics<parallel>, #tpu.dimension_semantics<arbitrary>], iteration_bounds = array<i64: 1, 2>, scalar_prefetch = 0 : i64, scratch_operands = 1 : i64, tpu.core_type = #tpu.core_type<tc>, window_params = [{transform_indices = @transform_0, window_bounds = array<i64: 16, 32>}, {transform_indices = @transform_1, window_bounds = array<i64: 1, 1, 32>}, {transform_indices = @transform_2, window_bounds = array<i64: 1, 1, 32>}, {transform_indices = @transform_3, window_bounds = array<i64: 1, 32, 96>}, {transform_indices = @transform_4, window_bounds = array<i64: 1, 1, 96>}, {transform_indices = @transform_5, window_bounds = array<i64: 1, 32, 32>}, {transform_indices = @transform_6, window_bounds = array<i64: 1, 1, 32>}, {transform_indices = @transform_7, window_bounds = array<i64: 1, 1, 32>}, {transform_indices = @transform_8, window_bounds = array<i64: 1, 1, 32>}, {transform_indices = @transform_9, window_bounds = array<i64: 1, 32, 64>}, {transform_indices = @transform_10, window_bounds = array<i64: 1, 1, 64>}, {transform_indices = @transform_11, window_bounds = array<i64: 1, 64, 32>}, {transform_indices = @transform_12, window_bounds = array<i64: 1, 1, 32>}, {pipeline_mode = #tpu.pipeline_mode<synchronous>, transform_indices = @transform_13, window_bounds = array<i64: 1, 32>}, {pipeline_mode = #tpu.pipeline_mode<synchronous>, transform_indices = @transform_14, window_bounds = array<i64: 1, 32>}, {pipeline_mode = #tpu.pipeline_mode<synchronous>, transform_indices = @transform_15, window_bounds = array<i64: 32, 128>}, {pipeline_mode = #tpu.pipeline_mode<synchronous>, transform_indices = @transform_16, window_bounds = array<i64: 1, 128>}, {transform_indices = @transform_17, window_bounds = array<i64: 16, 128>}]} {
    %c0_i32 = arith.constant 0 : i32
    %0 = arith.cmpi eq, %arg1, %c0_i32 : i32
    %1 = arith.extui %0 : i1 to i32
    %c0_i32_0 = arith.constant 0 : i32
    %2 = arith.cmpi ne, %1, %c0_i32_0 : i32
    scf.if %2 {
      %c0_83 = arith.constant 0 : index
      %c0_84 = arith.constant 0 : index
      %221 = vector.load %arg2[%c0_83, %c0_84] : memref<16x32xf32, #tpu.memory_space<vmem>>, vector<16x32xf32>
      %c0_85 = arith.constant 0 : index
      %c0_86 = arith.constant 0 : index
      %222 = vector.load %arg20[%c0_85, %c0_86] : memref<16x32xf32, #tpu.memory_space<vmem>>, vector<16x32xf32>
      tpu.vector_store %arg20[%c0_85, %c0_86], %221 {strides = array<i32>} : memref<16x32xf32, #tpu.memory_space<vmem>>, vector<16x32xf32>,
    } else {
    }
    %c0 = arith.constant 0 : index
    %c0_1 = arith.constant 0 : index
    %3 = vector.load %arg20[%c0, %c0_1] : memref<16x32xf32, #tpu.memory_space<vmem>>, vector<16x32xf32>
    %c0_2 = arith.constant 0 : index
    %c0_3 = arith.constant 0 : index
    %c0_4 = arith.constant 0 : index
    %4 = vector.load %arg3[%c0_2, %c0_3, %c0_4] : memref<1x1x32xf32, #tpu.memory_space<vmem>>, vector<1x1x32xf32>
    %5 = vector.shape_cast %4 : vector<1x1x32xf32> to vector<1x32xf32>
    %c0_5 = arith.constant 0 : index
    %c0_6 = arith.constant 0 : index
    %c0_7 = arith.constant 0 : index
    %6 = vector.load %arg4[%c0_5, %c0_6, %c0_7] : memref<1x1x32xf32, #tpu.memory_space<vmem>>, vector<1x1x32xf32>
    %7 = vector.shape_cast %6 : vector<1x1x32xf32> to vector<1x32xf32>
    %cst = arith.constant dense<0.000000e+00> : vector<16xf32>
    %8 = vector.multi_reduction <add>, %3, %cst [1] : vector<16x32xf32> to vector<16xf32>
    %9 = vector.shape_cast %8 : vector<16xf32> to vector<16x1xf32>
    %cst_8 = arith.constant 3.200000e+01 : f32
    %10 = vector.broadcast %cst_8 : f32 to vector<16x1xf32>
    %11 = arith.divf %9, %10 : vector<16x1xf32>
    %12 = vector.broadcast %11 : vector<16x1xf32> to vector<16x32xf32>
    %13 = arith.subf %3, %12 : vector<16x32xf32>
    %14 = arith.mulf %13, %13 : vector<16x32xf32>
    %cst_9 = arith.constant dense<0.000000e+00> : vector<16xf32>
    %15 = vector.multi_reduction <add>, %14, %cst_9 [1] : vector<16x32xf32> to vector<16xf32>
    %16 = vector.shape_cast %15 : vector<16xf32> to vector<16x1xf32>
    %cst_10 = arith.constant 3.200000e+01 : f32
    %17 = vector.broadcast %cst_10 : f32 to vector<16x1xf32>
    %18 = arith.divf %16, %17 : vector<16x1xf32>
    %19 = vector.broadcast %11 : vector<16x1xf32> to vector<16x32xf32>
    %20 = arith.subf %3, %19 : vector<16x32xf32>
    %cst_11 = arith.constant 9.99999974E-6 : f32
    %21 = vector.broadcast %cst_11 : f32 to vector<16x1xf32>
    %22 = arith.addf %18, %21 : vector<16x1xf32>
    %23 = math.rsqrt %22 : vector<16x1xf32>
    %24 = vector.broadcast %23 : vector<16x1xf32> to vector<16x32xf32>
    %25 = arith.mulf %20, %24 : vector<16x32xf32>
    %26 = vector.broadcast %5 : vector<1x32xf32> to vector<16x32xf32>
    %27 = arith.mulf %25, %26 : vector<16x32xf32>
    %28 = vector.broadcast %7 : vector<1x32xf32> to vector<16x32xf32>
    %29 = arith.addf %27, %28 : vector<16x32xf32>
    %30 = arith.truncf %29 : vector<16x32xf32> to vector<16x32xbf16>
    %c0_12 = arith.constant 0 : index
    %c0_13 = arith.constant 0 : index
    %c0_14 = arith.constant 0 : index
    %31 = vector.load %arg5[%c0_12, %c0_13, %c0_14] : memref<1x32x96xbf16, #tpu.memory_space<vmem>>, vector<1x32x96xbf16>
    %32 = vector.shape_cast %31 : vector<1x32x96xbf16> to vector<32x96xbf16>
    %cst_15 = arith.constant dense<0.000000e+00> : vector<16x96xf32>
    %33 = tpu.matmul %30, %32, %cst_15 {dimension_numbers = #tpu.dot_dimension_numbers<[1], [0], [0], [1], [0, 0, 1, 1], [], []>} : vector<16x32xbf16>, vector<32x96xbf16>, vector<16x96xf32> -> vector<16x96xf32>
    %c0_16 = arith.constant 0 : index
    %c0_17 = arith.constant 0 : index
    %c0_18 = arith.constant 0 : index
    %34 = vector.load %arg6[%c0_16, %c0_17, %c0_18] : memref<1x1x96xf32, #tpu.memory_space<vmem>>, vector<1x1x96xf32>
    %35 = vector.shape_cast %34 : vector<1x1x96xf32> to vector<1x96xf32>
    %36 = vector.broadcast %35 : vector<1x96xf32> to vector<16x96xf32>
    %37 = arith.addf %33, %36 : vector<16x96xf32>
    %38 = vector.extract_strided_slice %37 {offsets = [0, 0], sizes = [16, 32], strides = [1, 1]} : vector<16x96xf32> to vector<16x32xf32>
    %39 = vector.shape_cast %38 : vector<16x32xf32> to vector<2x8x32xf32>
    %40 = vector.extract_strided_slice %37 {offsets = [0, 32], sizes = [16, 32], strides = [1, 1]} : vector<16x96xf32> to vector<16x32xf32>
    %41 = vector.shape_cast %40 : vector<16x32xf32> to vector<2x8x32xf32>
    %42 = vector.extract_strided_slice %37 {offsets = [0, 64], sizes = [16, 32], strides = [1, 1]} : vector<16x96xf32> to vector<16x32xf32>
    %43 = vector.shape_cast %42 : vector<16x32xf32> to vector<2x8x32xf32>
    %44 = tpu.iota {dimensions = array<i32: 0>} : vector<8x8xi32>
    %45 = tpu.iota {dimensions = array<i32: 1>} : vector<8x8xi32>
    %46 = arith.cmpi sgt, %45, %44 : vector<8x8xi32>
    %47 = vector.shape_cast %46 : vector<8x8xi1> to vector<1x8x8xi1>
    %c0_19 = arith.constant 0 : index
    %c0_20 = arith.constant 0 : index
    %c0_21 = arith.constant 0 : index
    %48 = vector.load %arg7[%c0_19, %c0_20, %c0_21] : memref<1x32x32xbf16, #tpu.memory_space<vmem>>, vector<1x32x32xbf16>
    %49 = vector.shape_cast %48 : vector<1x32x32xbf16> to vector<32x32xbf16>
    %cst_22 = arith.constant 0.000000e+00 : f32
    %50 = vector.broadcast %cst_22 : f32 to vector<16x32xf32>
    %51 = vector.extract_strided_slice %39 {offsets = [0, 0, 0], sizes = [2, 8, 8], strides = [1, 1, 1]} : vector<2x8x32xf32> to vector<2x8x8xf32>
    %52 = arith.truncf %51 : vector<2x8x8xf32> to vector<2x8x8xbf16>
    %53 = vector.extract_strided_slice %41 {offsets = [0, 0, 0], sizes = [2, 8, 8], strides = [1, 1, 1]} : vector<2x8x32xf32> to vector<2x8x8xf32>
    %54 = arith.truncf %53 : vector<2x8x8xf32> to vector<2x8x8xbf16>
    %55 = vector.extract_strided_slice %43 {offsets = [0, 0, 0], sizes = [2, 8, 8], strides = [1, 1, 1]} : vector<2x8x32xf32> to vector<2x8x8xf32>
    %56 = arith.truncf %55 : vector<2x8x8xf32> to vector<2x8x8xbf16>
    "tpu.trace_start"() <{level = 10 : i32, message = "bqd,bkd->bqk"}> : () -> ()
    %cst_23 = arith.constant dense<0.000000e+00> : vector<2x8x8xf32>
    %57 = tpu.matmul %52, %54, %cst_23 {dimension_numbers = #tpu.dot_dimension_numbers<[2], [2], [1], [1], [0, 0, 0, 1, 1, 1], [0], [0]>} : vector<2x8x8xbf16>, vector<2x8x8xbf16>, vector<2x8x8xf32> -> vector<2x8x8xf32>
    %cst_24 = arith.constant -1.000000e+05 : f32
    "tpu.trace_stop"() : () -> ()
    %58 = vector.shape_cast %47 : vector<1x8x8xi1> to vector<1x8x8xi1>
    %59 = vector.broadcast %58 : vector<1x8x8xi1> to vector<2x8x8xi1>
    %60 = vector.broadcast %cst_24 : f32 to vector<2x8x8xf32>
    %61 = arith.select %59, %60, %57 : vector<2x8x8xi1>, vector<2x8x8xf32>
    %cst_25 = arith.constant dense<0xFF800000> : vector<2x8xf32>
    %62 = vector.multi_reduction <maximumf>, %61, %cst_25 [2] : vector<2x8x8xf32> to vector<2x8xf32>
    %cst_26 = arith.constant 0xFF800000 : f32
    %63 = vector.broadcast %cst_26 : f32 to vector<2x8xf32>
    %64 = arith.maximumf %63, %62 : vector<2x8xf32>
    %65 = vector.shape_cast %64 : vector<2x8xf32> to vector<2x8x1xf32>
    %66 = vector.broadcast %65 : vector<2x8x1xf32> to vector<2x8x8xf32>
    %67 = arith.subf %61, %66 : vector<2x8x8xf32>
    %68 = math.exp %67 : vector<2x8x8xf32>
    %cst_27 = arith.constant dense<0.000000e+00> : vector<2x8xf32>
    %69 = vector.multi_reduction <add>, %68, %cst_27 [2] : vector<2x8x8xf32> to vector<2x8xf32>
    %70 = vector.shape_cast %69 : vector<2x8xf32> to vector<2x8x1xf32>
    %71 = vector.broadcast %70 : vector<2x8x1xf32> to vector<2x8x8xf32>
    %72 = arith.divf %68, %71 : vector<2x8x8xf32>
    %73 = arith.truncf %72 : vector<2x8x8xf32> to vector<2x8x8xbf16>
    "tpu.trace_start"() <{level = 10 : i32, message = "bqk,bkd->bqd"}> : () -> ()
    %cst_28 = arith.constant dense<0.000000e+00> : vector<2x8x8xf32>
    %74 = tpu.matmul %73, %56, %cst_28 {dimension_numbers = #tpu.dot_dimension_numbers<[2], [1], [1], [2], [0, 0, 0, 1, 1, 2], [0], [0]>} : vector<2x8x8xbf16>, vector<2x8x8xbf16>, vector<2x8x8xf32> -> vector<2x8x8xf32>
    "tpu.trace_stop"() : () -> ()
    %75 = vector.shape_cast %74 : vector<2x8x8xf32> to vector<16x8xf32>
    %76 = arith.truncf %75 : vector<16x8xf32> to vector<16x8xbf16>
    %77 = vector.extract_strided_slice %49 {offsets = [0, 0], sizes = [8, 32], strides = [1, 1]} : vector<32x32xbf16> to vector<8x32xbf16>
    %cst_29 = arith.constant dense<0.000000e+00> : vector<16x32xf32>
    %78 = tpu.matmul %76, %77, %cst_29 {dimension_numbers = #tpu.dot_dimension_numbers<[1], [0], [0], [1], [0, 0, 1, 1], [], []>} : vector<16x8xbf16>, vector<8x32xbf16>, vector<16x32xf32> -> vector<16x32xf32>
    %79 = arith.addf %50, %78 : vector<16x32xf32>
    %80 = vector.extract_strided_slice %39 {offsets = [0, 0, 8], sizes = [2, 8, 8], strides = [1, 1, 1]} : vector<2x8x32xf32> to vector<2x8x8xf32>
    %81 = arith.truncf %80 : vector<2x8x8xf32> to vector<2x8x8xbf16>
    %82 = vector.extract_strided_slice %41 {offsets = [0, 0, 8], sizes = [2, 8, 8], strides = [1, 1, 1]} : vector<2x8x32xf32> to vector<2x8x8xf32>
    %83 = arith.truncf %82 : vector<2x8x8xf32> to vector<2x8x8xbf16>
    %84 = vector.extract_strided_slice %43 {offsets = [0, 0, 8], sizes = [2, 8, 8], strides = [1, 1, 1]} : vector<2x8x32xf32> to vector<2x8x8xf32>
    %85 = arith.truncf %84 : vector<2x8x8xf32> to vector<2x8x8xbf16>
    "tpu.trace_start"() <{level = 10 : i32, message = "bqd,bkd->bqk"}> : () -> ()
    %cst_30 = arith.constant dense<0.000000e+00> : vector<2x8x8xf32>
    %86 = tpu.matmul %81, %83, %cst_30 {dimension_numbers = #tpu.dot_dimension_numbers<[2], [2], [1], [1], [0, 0, 0, 1, 1, 1], [0], [0]>} : vector<2x8x8xbf16>, vector<2x8x8xbf16>, vector<2x8x8xf32> -> vector<2x8x8xf32>
    %cst_31 = arith.constant -1.000000e+05 : f32
    "tpu.trace_stop"() : () -> ()
    %87 = vector.shape_cast %47 : vector<1x8x8xi1> to vector<1x8x8xi1>
    %88 = vector.broadcast %87 : vector<1x8x8xi1> to vector<2x8x8xi1>
    %89 = vector.broadcast %cst_31 : f32 to vector<2x8x8xf32>
    %90 = arith.select %88, %89, %86 : vector<2x8x8xi1>, vector<2x8x8xf32>
    %cst_32 = arith.constant dense<0xFF800000> : vector<2x8xf32>
    %91 = vector.multi_reduction <maximumf>, %90, %cst_32 [2] : vector<2x8x8xf32> to vector<2x8xf32>
    %cst_33 = arith.constant 0xFF800000 : f32
    %92 = vector.broadcast %cst_33 : f32 to vector<2x8xf32>
    %93 = arith.maximumf %92, %91 : vector<2x8xf32>
    %94 = vector.shape_cast %93 : vector<2x8xf32> to vector<2x8x1xf32>
    %95 = vector.broadcast %94 : vector<2x8x1xf32> to vector<2x8x8xf32>
    %96 = arith.subf %90, %95 : vector<2x8x8xf32>
    %97 = math.exp %96 : vector<2x8x8xf32>
    %cst_34 = arith.constant dense<0.000000e+00> : vector<2x8xf32>
    %98 = vector.multi_reduction <add>, %97, %cst_34 [2] : vector<2x8x8xf32> to vector<2x8xf32>
    %99 = vector.shape_cast %98 : vector<2x8xf32> to vector<2x8x1xf32>
    %100 = vector.broadcast %99 : vector<2x8x1xf32> to vector<2x8x8xf32>
    %101 = arith.divf %97, %100 : vector<2x8x8xf32>
    %102 = arith.truncf %101 : vector<2x8x8xf32> to vector<2x8x8xbf16>
    "tpu.trace_start"() <{level = 10 : i32, message = "bqk,bkd->bqd"}> : () -> ()
    %cst_35 = arith.constant dense<0.000000e+00> : vector<2x8x8xf32>
    %103 = tpu.matmul %102, %85, %cst_35 {dimension_numbers = #tpu.dot_dimension_numbers<[2], [1], [1], [2], [0, 0, 0, 1, 1, 2], [0], [0]>} : vector<2x8x8xbf16>, vector<2x8x8xbf16>, vector<2x8x8xf32> -> vector<2x8x8xf32>
    "tpu.trace_stop"() : () -> ()
    %104 = vector.shape_cast %103 : vector<2x8x8xf32> to vector<16x8xf32>
    %105 = arith.truncf %104 : vector<16x8xf32> to vector<16x8xbf16>
    %106 = vector.extract_strided_slice %49 {offsets = [8, 0], sizes = [8, 32], strides = [1, 1]} : vector<32x32xbf16> to vector<8x32xbf16>
    %cst_36 = arith.constant dense<0.000000e+00> : vector<16x32xf32>
    %107 = tpu.matmul %105, %106, %cst_36 {dimension_numbers = #tpu.dot_dimension_numbers<[1], [0], [0], [1], [0, 0, 1, 1], [], []>} : vector<16x8xbf16>, vector<8x32xbf16>, vector<16x32xf32> -> vector<16x32xf32>
    %108 = arith.addf %79, %107 : vector<16x32xf32>
    %109 = vector.extract_strided_slice %39 {offsets = [0, 0, 16], sizes = [2, 8, 8], strides = [1, 1, 1]} : vector<2x8x32xf32> to vector<2x8x8xf32>
    %110 = arith.truncf %109 : vector<2x8x8xf32> to vector<2x8x8xbf16>
    %111 = vector.extract_strided_slice %41 {offsets = [0, 0, 16], sizes = [2, 8, 8], strides = [1, 1, 1]} : vector<2x8x32xf32> to vector<2x8x8xf32>
    %112 = arith.truncf %111 : vector<2x8x8xf32> to vector<2x8x8xbf16>
    %113 = vector.extract_strided_slice %43 {offsets = [0, 0, 16], sizes = [2, 8, 8], strides = [1, 1, 1]} : vector<2x8x32xf32> to vector<2x8x8xf32>
    %114 = arith.truncf %113 : vector<2x8x8xf32> to vector<2x8x8xbf16>
    "tpu.trace_start"() <{level = 10 : i32, message = "bqd,bkd->bqk"}> : () -> ()
    %cst_37 = arith.constant dense<0.000000e+00> : vector<2x8x8xf32>
    %115 = tpu.matmul %110, %112, %cst_37 {dimension_numbers = #tpu.dot_dimension_numbers<[2], [2], [1], [1], [0, 0, 0, 1, 1, 1], [0], [0]>} : vector<2x8x8xbf16>, vector<2x8x8xbf16>, vector<2x8x8xf32> -> vector<2x8x8xf32>
    %cst_38 = arith.constant -1.000000e+05 : f32
    "tpu.trace_stop"() : () -> ()
    %116 = vector.shape_cast %47 : vector<1x8x8xi1> to vector<1x8x8xi1>
    %117 = vector.broadcast %116 : vector<1x8x8xi1> to vector<2x8x8xi1>
    %118 = vector.broadcast %cst_38 : f32 to vector<2x8x8xf32>
    %119 = arith.select %117, %118, %115 : vector<2x8x8xi1>, vector<2x8x8xf32>
    %cst_39 = arith.constant dense<0xFF800000> : vector<2x8xf32>
    %120 = vector.multi_reduction <maximumf>, %119, %cst_39 [2] : vector<2x8x8xf32> to vector<2x8xf32>
    %cst_40 = arith.constant 0xFF800000 : f32
    %121 = vector.broadcast %cst_40 : f32 to vector<2x8xf32>
    %122 = arith.maximumf %121, %120 : vector<2x8xf32>
    %123 = vector.shape_cast %122 : vector<2x8xf32> to vector<2x8x1xf32>
    %124 = vector.broadcast %123 : vector<2x8x1xf32> to vector<2x8x8xf32>
    %125 = arith.subf %119, %124 : vector<2x8x8xf32>
    %126 = math.exp %125 : vector<2x8x8xf32>
    %cst_41 = arith.constant dense<0.000000e+00> : vector<2x8xf32>
    %127 = vector.multi_reduction <add>, %126, %cst_41 [2] : vector<2x8x8xf32> to vector<2x8xf32>
    %128 = vector.shape_cast %127 : vector<2x8xf32> to vector<2x8x1xf32>
    %129 = vector.broadcast %128 : vector<2x8x1xf32> to vector<2x8x8xf32>
    %130 = arith.divf %126, %129 : vector<2x8x8xf32>
    %131 = arith.truncf %130 : vector<2x8x8xf32> to vector<2x8x8xbf16>
    "tpu.trace_start"() <{level = 10 : i32, message = "bqk,bkd->bqd"}> : () -> ()
    %cst_42 = arith.constant dense<0.000000e+00> : vector<2x8x8xf32>
    %132 = tpu.matmul %131, %114, %cst_42 {dimension_numbers = #tpu.dot_dimension_numbers<[2], [1], [1], [2], [0, 0, 0, 1, 1, 2], [0], [0]>} : vector<2x8x8xbf16>, vector<2x8x8xbf16>, vector<2x8x8xf32> -> vector<2x8x8xf32>
    "tpu.trace_stop"() : () -> ()
    %133 = vector.shape_cast %132 : vector<2x8x8xf32> to vector<16x8xf32>
    %134 = arith.truncf %133 : vector<16x8xf32> to vector<16x8xbf16>
    %135 = vector.extract_strided_slice %49 {offsets = [16, 0], sizes = [8, 32], strides = [1, 1]} : vector<32x32xbf16> to vector<8x32xbf16>
    %cst_43 = arith.constant dense<0.000000e+00> : vector<16x32xf32>
    %136 = tpu.matmul %134, %135, %cst_43 {dimension_numbers = #tpu.dot_dimension_numbers<[1], [0], [0], [1], [0, 0, 1, 1], [], []>} : vector<16x8xbf16>, vector<8x32xbf16>, vector<16x32xf32> -> vector<16x32xf32>
    %137 = arith.addf %108, %136 : vector<16x32xf32>
    %138 = vector.extract_strided_slice %39 {offsets = [0, 0, 24], sizes = [2, 8, 8], strides = [1, 1, 1]} : vector<2x8x32xf32> to vector<2x8x8xf32>
    %139 = arith.truncf %138 : vector<2x8x8xf32> to vector<2x8x8xbf16>
    %140 = vector.extract_strided_slice %41 {offsets = [0, 0, 24], sizes = [2, 8, 8], strides = [1, 1, 1]} : vector<2x8x32xf32> to vector<2x8x8xf32>
    %141 = arith.truncf %140 : vector<2x8x8xf32> to vector<2x8x8xbf16>
    %142 = vector.extract_strided_slice %43 {offsets = [0, 0, 24], sizes = [2, 8, 8], strides = [1, 1, 1]} : vector<2x8x32xf32> to vector<2x8x8xf32>
    %143 = arith.truncf %142 : vector<2x8x8xf32> to vector<2x8x8xbf16>
    "tpu.trace_start"() <{level = 10 : i32, message = "bqd,bkd->bqk"}> : () -> ()
    %cst_44 = arith.constant dense<0.000000e+00> : vector<2x8x8xf32>
    %144 = tpu.matmul %139, %141, %cst_44 {dimension_numbers = #tpu.dot_dimension_numbers<[2], [2], [1], [1], [0, 0, 0, 1, 1, 1], [0], [0]>} : vector<2x8x8xbf16>, vector<2x8x8xbf16>, vector<2x8x8xf32> -> vector<2x8x8xf32>
    %cst_45 = arith.constant -1.000000e+05 : f32
    "tpu.trace_stop"() : () -> ()
    %145 = vector.shape_cast %47 : vector<1x8x8xi1> to vector<1x8x8xi1>
    %146 = vector.broadcast %145 : vector<1x8x8xi1> to vector<2x8x8xi1>
    %147 = vector.broadcast %cst_45 : f32 to vector<2x8x8xf32>
    %148 = arith.select %146, %147, %144 : vector<2x8x8xi1>, vector<2x8x8xf32>
    %cst_46 = arith.constant dense<0xFF800000> : vector<2x8xf32>
    %149 = vector.multi_reduction <maximumf>, %148, %cst_46 [2] : vector<2x8x8xf32> to vector<2x8xf32>
    %cst_47 = arith.constant 0xFF800000 : f32
    %150 = vector.broadcast %cst_47 : f32 to vector<2x8xf32>
    %151 = arith.maximumf %150, %149 : vector<2x8xf32>
    %152 = vector.shape_cast %151 : vector<2x8xf32> to vector<2x8x1xf32>
    %153 = vector.broadcast %152 : vector<2x8x1xf32> to vector<2x8x8xf32>
    %154 = arith.subf %148, %153 : vector<2x8x8xf32>
    %155 = math.exp %154 : vector<2x8x8xf32>
    %cst_48 = arith.constant dense<0.000000e+00> : vector<2x8xf32>
    %156 = vector.multi_reduction <add>, %155, %cst_48 [2] : vector<2x8x8xf32> to vector<2x8xf32>
    %157 = vector.shape_cast %156 : vector<2x8xf32> to vector<2x8x1xf32>
    %158 = vector.broadcast %157 : vector<2x8x1xf32> to vector<2x8x8xf32>
    %159 = arith.divf %155, %158 : vector<2x8x8xf32>
    %160 = arith.truncf %159 : vector<2x8x8xf32> to vector<2x8x8xbf16>
    "tpu.trace_start"() <{level = 10 : i32, message = "bqk,bkd->bqd"}> : () -> ()
    %cst_49 = arith.constant dense<0.000000e+00> : vector<2x8x8xf32>
    %161 = tpu.matmul %160, %143, %cst_49 {dimension_numbers = #tpu.dot_dimension_numbers<[2], [1], [1], [2], [0, 0, 0, 1, 1, 2], [0], [0]>} : vector<2x8x8xbf16>, vector<2x8x8xbf16>, vector<2x8x8xf32> -> vector<2x8x8xf32>
    "tpu.trace_stop"() : () -> ()
    %162 = vector.shape_cast %161 : vector<2x8x8xf32> to vector<16x8xf32>
    %163 = arith.truncf %162 : vector<16x8xf32> to vector<16x8xbf16>
    %164 = vector.extract_strided_slice %49 {offsets = [24, 0], sizes = [8, 32], strides = [1, 1]} : vector<32x32xbf16> to vector<8x32xbf16>
    %cst_50 = arith.constant dense<0.000000e+00> : vector<16x32xf32>
    %165 = tpu.matmul %163, %164, %cst_50 {dimension_numbers = #tpu.dot_dimension_numbers<[1], [0], [0], [1], [0, 0, 1, 1], [], []>} : vector<16x8xbf16>, vector<8x32xbf16>, vector<16x32xf32> -> vector<16x32xf32>
    %166 = arith.addf %137, %165 : vector<16x32xf32>
    %c0_51 = arith.constant 0 : index
    %c0_52 = arith.constant 0 : index
    %c0_53 = arith.constant 0 : index
    %167 = vector.load %arg8[%c0_51, %c0_52, %c0_53] : memref<1x1x32xf32, #tpu.memory_space<vmem>>, vector<1x1x32xf32>
    %168 = vector.shape_cast %167 : vector<1x1x32xf32> to vector<1x32xf32>
    %169 = vector.broadcast %168 : vector<1x32xf32> to vector<16x32xf32>
    %170 = arith.addf %166, %169 : vector<16x32xf32>
    %171 = arith.addf %3, %170 : vector<16x32xf32>
    %c0_54 = arith.constant 0 : index
    %c0_55 = arith.constant 0 : index
    %c0_56 = arith.constant 0 : index
    %172 = vector.load %arg9[%c0_54, %c0_55, %c0_56] : memref<1x1x32xf32, #tpu.memory_space<vmem>>, vector<1x1x32xf32>
    %173 = vector.shape_cast %172 : vector<1x1x32xf32> to vector<1x32xf32>
    %c0_57 = arith.constant 0 : index
    %c0_58 = arith.constant 0 : index
    %c0_59 = arith.constant 0 : index
    %174 = vector.load %arg10[%c0_57, %c0_58, %c0_59] : memref<1x1x32xf32, #tpu.memory_space<vmem>>, vector<1x1x32xf32>
    %175 = vector.shape_cast %174 : vector<1x1x32xf32> to vector<1x32xf32>
    %cst_60 = arith.constant dense<0.000000e+00> : vector<16xf32>
    %176 = vector.multi_reduction <add>, %171, %cst_60 [1] : vector<16x32xf32> to vector<16xf32>
    %177 = vector.shape_cast %176 : vector<16xf32> to vector<16x1xf32>
    %cst_61 = arith.constant 3.200000e+01 : f32
    %178 = vector.broadcast %cst_61 : f32 to vector<16x1xf32>
    %179 = arith.divf %177, %178 : vector<16x1xf32>
    %180 = vector.broadcast %179 : vector<16x1xf32> to vector<16x32xf32>
    %181 = arith.subf %171, %180 : vector<16x32xf32>
    %182 = arith.mulf %181, %181 : vector<16x32xf32>
    %cst_62 = arith.constant dense<0.000000e+00> : vector<16xf32>
    %183 = vector.multi_reduction <add>, %182, %cst_62 [1] : vector<16x32xf32> to vector<16xf32>
    %184 = vector.shape_cast %183 : vector<16xf32> to vector<16x1xf32>
    %cst_63 = arith.constant 3.200000e+01 : f32
    %185 = vector.broadcast %cst_63 : f32 to vector<16x1xf32>
    %186 = arith.divf %184, %185 : vector<16x1xf32>
    %187 = vector.broadcast %179 : vector<16x1xf32> to vector<16x32xf32>
    %188 = arith.subf %171, %187 : vector<16x32xf32>
    %cst_64 = arith.constant 9.99999974E-6 : f32
    %189 = vector.broadcast %cst_64 : f32 to vector<16x1xf32>
    %190 = arith.addf %186, %189 : vector<16x1xf32>
    %191 = math.rsqrt %190 : vector<16x1xf32>
    %192 = vector.broadcast %191 : vector<16x1xf32> to vector<16x32xf32>
    %193 = arith.mulf %188, %192 : vector<16x32xf32>
    %194 = vector.broadcast %173 : vector<1x32xf32> to vector<16x32xf32>
    %195 = arith.mulf %193, %194 : vector<16x32xf32>
    %196 = vector.broadcast %175 : vector<1x32xf32> to vector<16x32xf32>
    %197 = arith.addf %195, %196 : vector<16x32xf32>
    %198 = arith.truncf %197 : vector<16x32xf32> to vector<16x32xbf16>
    %c0_65 = arith.constant 0 : index
    %c0_66 = arith.constant 0 : index
    %c0_67 = arith.constant 0 : index
    %199 = vector.load %arg11[%c0_65, %c0_66, %c0_67] : memref<1x32x64xbf16, #tpu.memory_space<vmem>>, vector<1x32x64xbf16>
    %200 = vector.shape_cast %199 : vector<1x32x64xbf16> to vector<32x64xbf16>
    %cst_68 = arith.constant dense<0.000000e+00> : vector<16x64xf32>
    %201 = tpu.matmul %198, %200, %cst_68 {dimension_numbers = #tpu.dot_dimension_numbers<[1], [0], [0], [1], [0, 0, 1, 1], [], []>} : vector<16x32xbf16>, vector<32x64xbf16>, vector<16x64xf32> -> vector<16x64xf32>
    %c0_69 = arith.constant 0 : index
    %c0_70 = arith.constant 0 : index
    %c0_71 = arith.constant 0 : index
    %202 = vector.load %arg12[%c0_69, %c0_70, %c0_71] : memref<1x1x64xf32, #tpu.memory_space<vmem>>, vector<1x1x64xf32>
    %203 = vector.shape_cast %202 : vector<1x1x64xf32> to vector<1x64xf32>
    %204 = vector.broadcast %203 : vector<1x64xf32> to vector<16x64xf32>
    %205 = arith.addf %201, %204 : vector<16x64xf32>
    %cst_72 = arith.constant 0.000000e+00 : f32
    %206 = vector.broadcast %cst_72 : f32 to vector<16x64xf32>
    %207 = arith.maximumf %205, %206 : vector<16x64xf32>
    %208 = arith.truncf %207 : vector<16x64xf32> to vector<16x64xbf16>
    %c0_73 = arith.constant 0 : index
    %c0_74 = arith.constant 0 : index
    %c0_75 = arith.constant 0 : index
    %209 = vector.load %arg13[%c0_73, %c0_74, %c0_75] : memref<1x64x32xbf16, #tpu.memory_space<vmem>>, vector<1x64x32xbf16>
    %210 = vector.shape_cast %209 : vector<1x64x32xbf16> to vector<64x32xbf16>
    %cst_76 = arith.constant dense<0.000000e+00> : vector<16x32xf32>
    %211 = tpu.matmul %208, %210, %cst_76 {dimension_numbers = #tpu.dot_dimension_numbers<[1], [0], [0], [1], [0, 0, 1, 1], [], []>} : vector<16x64xbf16>, vector<64x32xbf16>, vector<16x32xf32> -> vector<16x32xf32>
    %c0_77 = arith.constant 0 : index
    %c0_78 = arith.constant 0 : index
    %c0_79 = arith.constant 0 : index
    %212 = vector.load %arg14[%c0_77, %c0_78, %c0_79] : memref<1x1x32xf32, #tpu.memory_space<vmem>>, vector<1x1x32xf32>
    %213 = vector.shape_cast %212 : vector<1x1x32xf32> to vector<1x32xf32>
    %214 = vector.broadcast %213 : vector<1x32xf32> to vector<16x32xf32>
    %215 = arith.addf %211, %214 : vector<16x32xf32>
    %216 = arith.addf %171, %215 : vector<16x32xf32>
    %c0_80 = arith.constant 0 : index
    %c0_81 = arith.constant 0 : index
    %217 = vector.load %arg20[%c0_80, %c0_81] : memref<16x32xf32, #tpu.memory_space<vmem>>, vector<16x32xf32>
    tpu.vector_store %arg20[%c0_80, %c0_81], %216 {strides = array<i32>} : memref<16x32xf32, #tpu.memory_space<vmem>>, vector<16x32xf32>,
    %c1_i32 = arith.constant 1 : i32
    %218 = arith.cmpi eq, %arg1, %c1_i32 : i32
    %219 = arith.extui %218 : i1 to i32
    %c0_i32_82 = arith.constant 0 : i32
    %220 = arith.cmpi ne, %219, %c0_i32_82 : i32
    scf.if %220 {
      %c0_83 = arith.constant 0 : index
      %c0_84 = arith.constant 0 : index
      %221 = vector.load %arg15[%c0_83, %c0_84] : memref<1x32xf32, #tpu.memory_space<vmem>>, vector<1x32xf32>
      %c0_85 = arith.constant 0 : index
      %c0_86 = arith.constant 0 : index
      %222 = vector.load %arg16[%c0_85, %c0_86] : memref<1x32xf32, #tpu.memory_space<vmem>>, vector<1x32xf32>
      %cst_87 = arith.constant dense<0.000000e+00> : vector<16xf32>
      %223 = vector.multi_reduction <add>, %216, %cst_87 [1] : vector<16x32xf32> to vector<16xf32>
      %224 = vector.shape_cast %223 : vector<16xf32> to vector<16x1xf32>
      %cst_88 = arith.constant 3.200000e+01 : f32
      %225 = vector.broadcast %cst_88 : f32 to vector<16x1xf32>
      %226 = arith.divf %224, %225 : vector<16x1xf32>
      %227 = vector.broadcast %226 : vector<16x1xf32> to vector<16x32xf32>
      %228 = arith.subf %216, %227 : vector<16x32xf32>
      %229 = arith.mulf %228, %228 : vector<16x32xf32>
      %cst_89 = arith.constant dense<0.000000e+00> : vector<16xf32>
      %230 = vector.multi_reduction <add>, %229, %cst_89 [1] : vector<16x32xf32> to vector<16xf32>
      %231 = vector.shape_cast %230 : vector<16xf32> to vector<16x1xf32>
      %cst_90 = arith.constant 3.200000e+01 : f32
      %232 = vector.broadcast %cst_90 : f32 to vector<16x1xf32>
      %233 = arith.divf %231, %232 : vector<16x1xf32>
      %234 = vector.broadcast %226 : vector<16x1xf32> to vector<16x32xf32>
      %235 = arith.subf %216, %234 : vector<16x32xf32>
      %cst_91 = arith.constant 9.99999974E-6 : f32
      %236 = vector.broadcast %cst_91 : f32 to vector<16x1xf32>
      %237 = arith.addf %233, %236 : vector<16x1xf32>
      %238 = math.rsqrt %237 : vector<16x1xf32>
      %239 = vector.broadcast %238 : vector<16x1xf32> to vector<16x32xf32>
      %240 = arith.mulf %235, %239 : vector<16x32xf32>
      %241 = vector.broadcast %221 : vector<1x32xf32> to vector<16x32xf32>
      %242 = arith.mulf %240, %241 : vector<16x32xf32>
      %243 = vector.broadcast %222 : vector<1x32xf32> to vector<16x32xf32>
      %244 = arith.addf %242, %243 : vector<16x32xf32>
      %245 = arith.truncf %244 : vector<16x32xf32> to vector<16x32xbf16>
      %c0_92 = arith.constant 0 : index
      %c0_93 = arith.constant 0 : index
      %246 = vector.load %arg17[%c0_92, %c0_93] : memref<32x128xbf16, #tpu.memory_space<vmem>>, vector<32x128xbf16>
      %cst_94 = arith.constant dense<0.000000e+00> : vector<16x128xf32>
      %247 = tpu.matmul %245, %246, %cst_94 {dimension_numbers = #tpu.dot_dimension_numbers<[1], [0], [0], [1], [0, 0, 1, 1], [], []>} : vector<16x32xbf16>, vector<32x128xbf16>, vector<16x128xf32> -> vector<16x128xf32>
      %c0_95 = arith.constant 0 : index
      %c0_96 = arith.constant 0 : index
      %248 = vector.load %arg18[%c0_95, %c0_96] : memref<1x128xf32, #tpu.memory_space<vmem>>, vector<1x128xf32>
      %249 = vector.broadcast %248 : vector<1x128xf32> to vector<16x128xf32>
      %250 = arith.addf %247, %249 : vector<16x128xf32>
      %c0_97 = arith.constant 0 : index
      %c0_98 = arith.constant 0 : index
      %251 = vector.load %arg19[%c0_97, %c0_98] : memref<16x128xf32, #tpu.memory_space<vmem>>, vector<16x128xf32>
      tpu.vector_store %arg19[%c0_97, %c0_98], %250 {strides = array<i32>} : memref<16x128xf32, #tpu.memory_space<vmem>>, vector<16x128xf32>,
    } else {
    }
    return
  }
  func.func @transform_0(%arg0: i32, %arg1: i32) -> (i32, i32) {
    %c0_i32 = arith.constant 0 : i32
    %c0_i32_0 = arith.constant 0 : i32
    return %arg0, %c0_i32 : i32, i32
  }
  func.func @transform_1(%arg0: i32, %arg1: i32) -> (i32, i32, i32) {
    %c0_i32 = arith.constant 0 : i32
    %c0_i32_0 = arith.constant 0 : i32
    %c0_i32_1 = arith.constant 0 : i32
    return %arg1, %c0_i32, %c0_i32_0 : i32, i32, i32
  }
  func.func @transform_2(%arg0: i32, %arg1: i32) -> (i32, i32, i32) {
    %c0_i32 = arith.constant 0 : i32
    %c0_i32_0 = arith.constant 0 : i32
    %c0_i32_1 = arith.constant 0 : i32
    return %arg1, %c0_i32, %c0_i32_0 : i32, i32, i32
  }
  func.func @transform_3(%arg0: i32, %arg1: i32) -> (i32, i32, i32) {
    %c0_i32 = arith.constant 0 : i32
    %c0_i32_0 = arith.constant 0 : i32
    %c0_i32_1 = arith.constant 0 : i32
    return %arg1, %c0_i32, %c0_i32_0 : i32, i32, i32
  }
  func.func @transform_4(%arg0: i32, %arg1: i32) -> (i32, i32, i32) {
    %c0_i32 = arith.constant 0 : i32
    %c0_i32_0 = arith.constant 0 : i32
    %c0_i32_1 = arith.constant 0 : i32
    return %arg1, %c0_i32, %c0_i32_0 : i32, i32, i32
  }
  func.func @transform_5(%arg0: i32, %arg1: i32) -> (i32, i32, i32) {
    %c0_i32 = arith.constant 0 : i32
    %c0_i32_0 = arith.constant 0 : i32
    %c0_i32_1 = arith.constant 0 : i32
    return %arg1, %c0_i32, %c0_i32_0 : i32, i32, i32
  }
  func.func @transform_6(%arg0: i32, %arg1: i32) -> (i32, i32, i32) {
    %c0_i32 = arith.constant 0 : i32
    %c0_i32_0 = arith.constant 0 : i32
    %c0_i32_1 = arith.constant 0 : i32
    return %arg1, %c0_i32, %c0_i32_0 : i32, i32, i32
  }
  func.func @transform_7(%arg0: i32, %arg1: i32) -> (i32, i32, i32) {
    %c0_i32 = arith.constant 0 : i32
    %c0_i32_0 = arith.constant 0 : i32
    %c0_i32_1 = arith.constant 0 : i32
    return %arg1, %c0_i32, %c0_i32_0 : i32, i32, i32
  }
  func.func @transform_8(%arg0: i32, %arg1: i32) -> (i32, i32, i32) {
    %c0_i32 = arith.constant 0 : i32
    %c0_i32_0 = arith.constant 0 : i32
    %c0_i32_1 = arith.constant 0 : i32
    return %arg1, %c0_i32, %c0_i32_0 : i32, i32, i32
  }
  func.func @transform_9(%arg0: i32, %arg1: i32) -> (i32, i32, i32) {
    %c0_i32 = arith.constant 0 : i32
    %c0_i32_0 = arith.constant 0 : i32
    %c0_i32_1 = arith.constant 0 : i32
    return %arg1, %c0_i32, %c0_i32_0 : i32, i32, i32
  }
  func.func @transform_10(%arg0: i32, %arg1: i32) -> (i32, i32, i32) {
    %c0_i32 = arith.constant 0 : i32
    %c0_i32_0 = arith.constant 0 : i32
    %c0_i32_1 = arith.constant 0 : i32
    return %arg1, %c0_i32, %c0_i32_0 : i32, i32, i32
  }
  func.func @transform_11(%arg0: i32, %arg1: i32) -> (i32, i32, i32) {
    %c0_i32 = arith.constant 0 : i32
    %c0_i32_0 = arith.constant 0 : i32
    %c0_i32_1 = arith.constant 0 : i32
    return %arg1, %c0_i32, %c0_i32_0 : i32, i32, i32
  }
  func.func @transform_12(%arg0: i32, %arg1: i32) -> (i32, i32, i32) {
    %c0_i32 = arith.constant 0 : i32
    %c0_i32_0 = arith.constant 0 : i32
    %c0_i32_1 = arith.constant 0 : i32
    return %arg1, %c0_i32, %c0_i32_0 : i32, i32, i32
  }
  func.func @transform_13(%arg0: i32, %arg1: i32) -> (i32, i32) {
    %c0_i32 = arith.constant 0 : i32
    %c0_i32_0 = arith.constant 0 : i32
    %c0_i32_1 = arith.constant 0 : i32
    return %c0_i32, %c0_i32_0 : i32, i32
  }
  func.func @transform_14(%arg0: i32, %arg1: i32) -> (i32, i32) {
    %c0_i32 = arith.constant 0 : i32
    %c0_i32_0 = arith.constant 0 : i32
    %c0_i32_1 = arith.constant 0 : i32
    return %c0_i32, %c0_i32_0 : i32, i32
  }
  func.func @transform_15(%arg0: i32, %arg1: i32) -> (i32, i32) {
    %c0_i32 = arith.constant 0 : i32
    %c0_i32_0 = arith.constant 0 : i32
    %c0_i32_1 = arith.constant 0 : i32
    return %c0_i32, %c0_i32_0 : i32, i32
  }
  func.func @transform_16(%arg0: i32, %arg1: i32) -> (i32, i32) {
    %c0_i32 = arith.constant 0 : i32
    %c0_i32_0 = arith.constant 0 : i32
    %c0_i32_1 = arith.constant 0 : i32
    return %c0_i32, %c0_i32_0 : i32, i32
  }
  func.func @transform_17(%arg0: i32, %arg1: i32) -> (i32, i32) {
    %c0_i32 = arith.constant 0 : i32
    %c0_i32_0 = arith.constant 0 : i32
    return %arg0, %c0_i32 : i32, i32
  }
}

</mosaic_0001>

<llo_original>
// kernel: transformer_forward.1
$region0: #{transformer_forward.1}
  #allocation0 [shape = 'u32[]', space=smem, size = 0x4, offset = 0x4, fixed_abs, tag = 'smem constant byte address 0x4 - core index']
  #allocation1 [shape = 'u32[144,128]{1,0:T(1,128)}', space=vmem, size = 0x12000, scoped, tag = 'internal scratch']
  #allocation2 [shape = 'f32[16,32]{1,0:T(8,128)}', space=vmem, size = 0x2000, scoped, tag = 'scratch operand']
  %s0 = inlined_call_operand.vmem [shape: f32[16,32], index: 0, kind: input, shape index: {}]
  %s1 = inlined_call_operand.vmem [shape: f32[2,1,32], index: 1, kind: input, shape index: {}]
  %s2 = inlined_call_operand.vmem [shape: f32[2,1,32], index: 2, kind: input, shape index: {}]
  %s3 = inlined_call_operand.vmem [shape: bf16[2,32,96], index: 3, kind: input, shape index: {}]
  %s4 = inlined_call_operand.vmem [shape: f32[2,1,96], index: 4, kind: input, shape index: {}]
  %s5 = inlined_call_operand.vmem [shape: bf16[2,32,32], index: 5, kind: input, shape index: {}]
  %s6 = inlined_call_operand.vmem [shape: f32[2,1,32], index: 6, kind: input, shape index: {}]
  %s7 = inlined_call_operand.vmem [shape: f32[2,1,32], index: 7, kind: input, shape index: {}]
  %s8 = inlined_call_operand.vmem [shape: f32[2,1,32], index: 8, kind: input, shape index: {}]
  %s9 = inlined_call_operand.vmem [shape: bf16[2,32,64], index: 9, kind: input, shape index: {}]
  %s10 = inlined_call_operand.vmem [shape: f32[2,1,64], index: 10, kind: input, shape index: {}]
  %s11 = inlined_call_operand.vmem [shape: bf16[2,64,32], index: 11, kind: input, shape index: {}]
  %s12 = inlined_call_operand.vmem [shape: f32[2,1,32], index: 12, kind: input, shape index: {}]
  %s13 = inlined_call_operand.vmem [shape: f32[1,32], index: 13, kind: input, shape index: {}]
  %s14 = inlined_call_operand.vmem [shape: f32[1,32], index: 14, kind: input, shape index: {}]
  %s15 = inlined_call_operand.vmem [shape: bf16[32,128], index: 15, kind: input, shape index: {}]
  %s16 = inlined_call_operand.vmem [shape: f32[1,128], index: 16, kind: input, shape index: {}]
  %s17 = inlined_call_operand.hbm [shape: f32[16,128], index: 17, kind: output, shape index: {}]
  %s18 = sld [smem:[#allocation0]]
  $region109: #{transformer_forward.1} parent=0
    _
  %s20 = ssub.s32 1, %s18
  %s21 = scalar_select 0, %s20, %s18
  $region1: #{transformer_forward.1} parent=0
    #allocation3 [shape = 'u8[8192]{0}', space=vmem, size = 0x2000, scoped, tag = 'output window, operand 0, single buffered']
    #allocation4 [shape = 's32[2]{0}', space=sflag, size = 0x8, scoped, tag = 'scoped memory for transformer_forward.1']
    %22 = vsyncpa [#allocation4], 0
    loop: start=0, step=1, limit=4
    $region2: #{transformer_forward.1} parent=1 // loop_pre_header
      _
    $region3: #{transformer_forward.1} parent=1 // loop_header
      %s24 = sphi 0, %s28
      %p25 = scmp.ge.s32.totalorder %s24, 4
      %s31 = sphi 0, %s43
      %s32 = sphi 0, %s39
      %s33 = sphi 0, %s31
      %s34 = sphi 0, %s32
      %s35 = sphi 0, %s33
      %s36 = sphi 0, %s34
      %s46 = sphi 0, %s48
      %s49 = sphi 0, %s46
      %s50 = sphi 0, %s49
      %s66 = sphi 0, %s50
      %s72 = sphi 0, %s74
      %s75 = sphi 0, %s72
      %s76 = sphi 0, %s75
      %s92 = sphi 0, %s76
      %s98 = sphi 0, %s100
      %s101 = sphi 0, %s98
      %s102 = sphi 0, %s101
      %s118 = sphi 0, %s102
      %s124 = sphi 0, %s126
      %s127 = sphi 0, %s124
      %s128 = sphi 0, %s127
      %s144 = sphi 0, %s128
      %s150 = sphi 0, %s152
      %s153 = sphi 0, %s150
      %s154 = sphi 0, %s153
      %s170 = sphi 0, %s154
      %s176 = sphi 0, %s178
      %s179 = sphi 0, %s176
      %s180 = sphi 0, %s179
      %s196 = sphi 0, %s180
      %s202 = sphi 0, %s204
      %s205 = sphi 0, %s202
      %s206 = sphi 0, %s205
      %s222 = sphi 0, %s206
      %s228 = sphi 0, %s230
      %s231 = sphi 0, %s228
      %s232 = sphi 0, %s231
      %s248 = sphi 0, %s232
      %s254 = sphi 0, %s256
      %s257 = sphi 0, %s254
      %s258 = sphi 0, %s257
      %s274 = sphi 0, %s258
      %s280 = sphi 0, %s282
      %s283 = sphi 0, %s280
      %s284 = sphi 0, %s283
      %s300 = sphi 0, %s284
      %s306 = sphi 0, %s308
      %s309 = sphi 0, %s306
      %s310 = sphi 0, %s309
      %s326 = sphi 0, %s310
      %s332 = sphi 0, %s334
      %s335 = sphi 0, %s332
      %s336 = sphi 0, %s335
      %s352 = sphi 0, %s336
      %s358 = sphi 0, %s360
      %s361 = sphi 0, %s358
      %s362 = sphi 0, %s361
      %s378 = sphi 0, %s362
      %s382 = sphi 0, %s382
      %s384 = sphi 0, %s382
      %s385 = sphi 0, %s384
      %s399 = sphi 0, %s385
      %s403 = sphi 0, %s403
      %s405 = sphi 0, %s403
      %s406 = sphi 0, %s405
      %s420 = sphi 0, %s406
      %s424 = sphi 0, %s424
      %s426 = sphi 0, %s424
      %s427 = sphi 0, %s426
      %s441 = sphi 0, %s427
      %s445 = sphi 0, %s445
      %s447 = sphi 0, %s445
      %s448 = sphi 0, %s447
      %s462 = sphi 0, %s448
      %s468 = sphi 0, %s470
      %s471 = sphi 0, %s468
      %s472 = sphi 0, %s471
      %s488 = sphi 0, %s472
    $region4: #{transformer_forward.1} parent=1 // loop_header_branch
      %27 = sbr.rel (%p25) target = $region8
    $region5: #{transformer_forward.1} parent=1 // loop_body
      %s29 = ssub.s32 %s24, 1
      %s30 = ssub.s32 %s24, 2
      %s37 = sadd.s32 1, %s32
      %p38 = scmp.ge.s32.totalorder %s37, 2
      %s39 = scalar_select %p38, 0, %s37
      %s40 = sadd.s32 1, %s31
      %s41 = scalar_select %p38, %s40, %s31
      %p42 = scmp.ge.s32.totalorder %s41, 1
      %s43 = scalar_select %p42, 0, %s41
      %s44 = ssub.s32 %s31, %s43
      %p45 = scmp.eq.s32.totalorder %s44, 0
      %s47 = sadd.s32 %s46, 1
      %s48 = scalar_select %p45, %s46, %s47
      %p51 = pneg %p45
      %p52 = scmp.eq.s32.totalorder %s24, 1
      %p53 = por %p51, %p52
      %p54 = scmp.ne.s32.totalorder %s46, %s49
      %p55 = scmp.eq.s32.totalorder %s24, 0
      %p56 = por %p54, %p55
      %p57 = scmp.ne.s32.totalorder %s46, %s49
      %p58 = scmp.eq.s32.totalorder %s29, 1
      %p59 = por %p57, %p58
      %p60 = scmp.ne.s32.totalorder %s49, %s50
      %p61 = scmp.eq.s32.totalorder %s29, 0
      %p62 = por %p60, %p61
      %p63 = scmp.ne.s32.totalorder %s49, %s50
      %p64 = scmp.eq.s32.totalorder %s30, 1
      %p65 = por %p63, %p64
      %p67 = scmp.ne.s32.totalorder %s50, %s66
      %p68 = scmp.eq.s32.totalorder %s30, 0
      %p69 = por %p67, %p68
      %s70 = ssub.s32 %s32, %s39
      %p71 = scmp.eq.s32.totalorder %s70, 0
      %s73 = sadd.s32 %s72, 1
      %s74 = scalar_select %p71, %s72, %s73
      %p77 = pneg %p71
      %p78 = scmp.eq.s32.totalorder %s24, 1
      %p79 = por %p77, %p78
      %p80 = scmp.ne.s32.totalorder %s72, %s75
      %p81 = scmp.eq.s32.totalorder %s24, 0
      %p82 = por %p80, %p81
      %p83 = scmp.ne.s32.totalorder %s72, %s75
      %p84 = scmp.eq.s32.totalorder %s29, 1
      %p85 = por %p83, %p84
      %p86 = scmp.ne.s32.totalorder %s75, %s76
      %p87 = scmp.eq.s32.totalorder %s29, 0
      %p88 = por %p86, %p87
      %p89 = scmp.ne.s32.totalorder %s75, %s76
      %p90 = scmp.eq.s32.totalorder %s30, 1
      %p91 = por %p89, %p90
      %p93 = scmp.ne.s32.totalorder %s76, %s92
      %p94 = scmp.eq.s32.totalorder %s30, 0
      %p95 = por %p93, %p94
      %s96 = ssub.s32 %s32, %s39
      %p97 = scmp.eq.s32.totalorder %s96, 0
      %s99 = sadd.s32 %s98, 1
      %s100 = scalar_select %p97, %s98, %s99
      %p103 = pneg %p97
      %p104 = scmp.eq.s32.totalorder %s24, 1
      %p105 = por %p103, %p104
      %p106 = scmp.ne.s32.totalorder %s98, %s101
      %p107 = scmp.eq.s32.totalorder %s24, 0
      %p108 = por %p106, %p107
      %p109 = scmp.ne.s32.totalorder %s98, %s101
      %p110 = scmp.eq.s32.totalorder %s29, 1
      %p111 = por %p109, %p110
      %p112 = scmp.ne.s32.totalorder %s101, %s102
      %p113 = scmp.eq.s32.totalorder %s29, 0
      %p114 = por %p112, %p113
      %p115 = scmp.ne.s32.totalorder %s101, %s102
      %p116 = scmp.eq.s32.totalorder %s30, 1
      %p117 = por %p115, %p116
      %p119 = scmp.ne.s32.totalorder %s102, %s118
      %p120 = scmp.eq.s32.totalorder %s30, 0
      %p121 = por %p119, %p120
      %s122 = ssub.s32 %s32, %s39
      %p123 = scmp.eq.s32.totalorder %s122, 0
      %s125 = sadd.s32 %s124, 1
      %s126 = scalar_select %p123, %s124, %s125
      %p129 = pneg %p123
      %p130 = scmp.eq.s32.totalorder %s24, 1
      %p131 = por %p129, %p130
      %p132 = scmp.ne.s32.totalorder %s124, %s127
      %p133 = scmp.eq.s32.totalorder %s24, 0
      %p134 = por %p132, %p133
      %p135 = scmp.ne.s32.totalorder %s124, %s127
      %p136 = scmp.eq.s32.totalorder %s29, 1
      %p137 = por %p135, %p136
      %p138 = scmp.ne.s32.totalorder %s127, %s128
      %p139 = scmp.eq.s32.totalorder %s29, 0
      %p140 = por %p138, %p139
      %p141 = scmp.ne.s32.totalorder %s127, %s128
      %p142 = scmp.eq.s32.totalorder %s30, 1
      %p143 = por %p141, %p142
      %p145 = scmp.ne.s32.totalorder %s128, %s144
      %p146 = scmp.eq.s32.totalorder %s30, 0
      %p147 = por %p145, %p146
      %s148 = ssub.s32 %s32, %s39
      %p149 = scmp.eq.s32.totalorder %s148, 0
      %s151 = sadd.s32 %s150, 1
      %s152 = scalar_select %p149, %s150, %s151
      %p155 = pneg %p149
      %p156 = scmp.eq.s32.totalorder %s24, 1
      %p157 = por %p155, %p156
      %p158 = scmp.ne.s32.totalorder %s150, %s153
      %p159 = scmp.eq.s32.totalorder %s24, 0
      %p160 = por %p158, %p159
      %p161 = scmp.ne.s32.totalorder %s150, %s153
      %p162 = scmp.eq.s32.totalorder %s29, 1
      %p163 = por %p161, %p162
      %p164 = scmp.ne.s32.totalorder %s153, %s154
      %p165 = scmp.eq.s32.totalorder %s29, 0
      %p166 = por %p164, %p165
      %p167 = scmp.ne.s32.totalorder %s153, %s154
      %p168 = scmp.eq.s32.totalorder %s30, 1
      %p169 = por %p167, %p168
      %p171 = scmp.ne.s32.totalorder %s154, %s170
      %p172 = scmp.eq.s32.totalorder %s30, 0
      %p173 = por %p171, %p172
      %s174 = ssub.s32 %s32, %s39
      %p175 = scmp.eq.s32.totalorder %s174, 0
      %s177 = sadd.s32 %s176, 1
      %s178 = scalar_select %p175, %s176, %s177
      %p181 = pneg %p175
      %p182 = scmp.eq.s32.totalorder %s24, 1
      %p183 = por %p181, %p182
      %p184 = scmp.ne.s32.totalorder %s176, %s179
      %p185 = scmp.eq.s32.totalorder %s24, 0
      %p186 = por %p184, %p185
      %p187 = scmp.ne.s32.totalorder %s176, %s179
      %p188 = scmp.eq.s32.totalorder %s29, 1
      %p189 = por %p187, %p188
      %p190 = scmp.ne.s32.totalorder %s179, %s180
      %p191 = scmp.eq.s32.totalorder %s29, 0
      %p192 = por %p190, %p191
      %p193 = scmp.ne.s32.totalorder %s179, %s180
      %p194 = scmp.eq.s32.totalorder %s30, 1
      %p195 = por %p193, %p194
      %p197 = scmp.ne.s32.totalorder %s180, %s196
      %p198 = scmp.eq.s32.totalorder %s30, 0
      %p199 = por %p197, %p198
      %s200 = ssub.s32 %s32, %s39
      %p201 = scmp.eq.s32.totalorder %s200, 0
      %s203 = sadd.s32 %s202, 1
      %s204 = scalar_select %p201, %s202, %s203
      %p207 = pneg %p201
      %p208 = scmp.eq.s32.totalorder %s24, 1
      %p209 = por %p207, %p208
      %p210 = scmp.ne.s32.totalorder %s202, %s205
      %p211 = scmp.eq.s32.totalorder %s24, 0
      %p212 = por %p210, %p211
      %p213 = scmp.ne.s32.totalorder %s202, %s205
      %p214 = scmp.eq.s32.totalorder %s29, 1
      %p215 = por %p213, %p214
      %p216 = scmp.ne.s32.totalorder %s205, %s206
      %p217 = scmp.eq.s32.totalorder %s29, 0
      %p218 = por %p216, %p217
      %p219 = scmp.ne.s32.totalorder %s205, %s206
      %p220 = scmp.eq.s32.totalorder %s30, 1
      %p221 = por %p219, %p220
      %p223 = scmp.ne.s32.totalorder %s206, %s222
      %p224 = scmp.eq.s32.totalorder %s30, 0
      %p225 = por %p223, %p224
      %s226 = ssub.s32 %s32, %s39
      %p227 = scmp.eq.s32.totalorder %s226, 0
      %s229 = sadd.s32 %s228, 1
      %s230 = scalar_select %p227, %s228, %s229
      %p233 = pneg %p227
      %p234 = scmp.eq.s32.totalorder %s24, 1
      %p235 = por %p233, %p234
      %p236 = scmp.ne.s32.totalorder %s228, %s231
      %p237 = scmp.eq.s32.totalorder %s24, 0
      %p238 = por %p236, %p237
      %p239 = scmp.ne.s32.totalorder %s228, %s231
      %p240 = scmp.eq.s32.totalorder %s29, 1
      %p241 = por %p239, %p240
      %p242 = scmp.ne.s32.totalorder %s231, %s232
      %p243 = scmp.eq.s32.totalorder %s29, 0
      %p244 = por %p242, %p243
      %p245 = scmp.ne.s32.totalorder %s231, %s232
      %p246 = scmp.eq.s32.totalorder %s30, 1
      %p247 = por %p245, %p246
      %p249 = scmp.ne.s32.totalorder %s232, %s248
      %p250 = scmp.eq.s32.totalorder %s30, 0
      %p251 = por %p249, %p250
      %s252 = ssub.s32 %s32, %s39
      %p253 = scmp.eq.s32.totalorder %s252, 0
      %s255 = sadd.s32 %s254, 1
      %s256 = scalar_select %p253, %s254, %s255
      %p259 = pneg %p253
      %p260 = scmp.eq.s32.totalorder %s24, 1
      %p261 = por %p259, %p260
      %p262 = scmp.ne.s32.totalorder %s254, %s257
      %p263 = scmp.eq.s32.totalorder %s24, 0
      %p264 = por %p262, %p263
      %p265 = scmp.ne.s32.totalorder %s254, %s257
      %p266 = scmp.eq.s32.totalorder %s29, 1
      %p267 = por %p265, %p266
      %p268 = scmp.ne.s32.totalorder %s257, %s258
      %p269 = scmp.eq.s32.totalorder %s29, 0
      %p270 = por %p268, %p269
      %p271 = scmp.ne.s32.totalorder %s257, %s258
      %p272 = scmp.eq.s32.totalorder %s30, 1
      %p273 = por %p271, %p272
      %p275 = scmp.ne.s32.totalorder %s258, %s274
      %p276 = scmp.eq.s32.totalorder %s30, 0
      %p277 = por %p275, %p276
      %s278 = ssub.s32 %s32, %s39
      %p279 = scmp.eq.s32.totalorder %s278, 0
      %s281 = sadd.s32 %s280, 1
      %s282 = scalar_select %p279, %s280, %s281
      %p285 = pneg %p279
      %p286 = scmp.eq.s32.totalorder %s24, 1
      %p287 = por %p285, %p286
      %p288 = scmp.ne.s32.totalorder %s280, %s283
      %p289 = scmp.eq.s32.totalorder %s24, 0
      %p290 = por %p288, %p289
      %p291 = scmp.ne.s32.totalorder %s280, %s283
      %p292 = scmp.eq.s32.totalorder %s29, 1
      %p293 = por %p291, %p292
      %p294 = scmp.ne.s32.totalorder %s283, %s284
      %p295 = scmp.eq.s32.totalorder %s29, 0
      %p296 = por %p294, %p295
      %p297 = scmp.ne.s32.totalorder %s283, %s284
      %p298 = scmp.eq.s32.totalorder %s30, 1
      %p299 = por %p297, %p298
      %p301 = scmp.ne.s32.totalorder %s284, %s300
      %p302 = scmp.eq.s32.totalorder %s30, 0
      %p303 = por %p301, %p302
      %s304 = ssub.s32 %s32, %s39
      %p305 = scmp.eq.s32.totalorder %s304, 0
      %s307 = sadd.s32 %s306, 1
      %s308 = scalar_select %p305, %s306, %s307
      %p311 = pneg %p305
      %p312 = scmp.eq.s32.totalorder %s24, 1
      %p313 = por %p311, %p312
      %p314 = scmp.ne.s32.totalorder %s306, %s309
      %p315 = scmp.eq.s32.totalorder %s24, 0
      %p316 = por %p314, %p315
      %p317 = scmp.ne.s32.totalorder %s306, %s309
      %p318 = scmp.eq.s32.totalorder %s29, 1
      %p319 = por %p317, %p318
      %p320 = scmp.ne.s32.totalorder %s309, %s310
      %p321 = scmp.eq.s32.totalorder %s29, 0
      %p322 = por %p320, %p321
      %p323 = scmp.ne.s32.totalorder %s309, %s310
      %p324 = scmp.eq.s32.totalorder %s30, 1
      %p325 = por %p323, %p324
      %p327 = scmp.ne.s32.totalorder %s310, %s326
      %p328 = scmp.eq.s32.totalorder %s30, 0
      %p329 = por %p327, %p328
      %s330 = ssub.s32 %s32, %s39
      %p331 = scmp.eq.s32.totalorder %s330, 0
      %s333 = sadd.s32 %s332, 1
      %s334 = scalar_select %p331, %s332, %s333
      %p337 = pneg %p331
      %p338 = scmp.eq.s32.totalorder %s24, 1
      %p339 = por %p337, %p338
      %p340 = scmp.ne.s32.totalorder %s332, %s335
      %p341 = scmp.eq.s32.totalorder %s24, 0
      %p342 = por %p340, %p341
      %p343 = scmp.ne.s32.totalorder %s332, %s335
      %p344 = scmp.eq.s32.totalorder %s29, 1
      %p345 = por %p343, %p344
      %p346 = scmp.ne.s32.totalorder %s335, %s336
      %p347 = scmp.eq.s32.totalorder %s29, 0
      %p348 = por %p346, %p347
      %p349 = scmp.ne.s32.totalorder %s335, %s336
      %p350 = scmp.eq.s32.totalorder %s30, 1
      %p351 = por %p349, %p350
      %p353 = scmp.ne.s32.totalorder %s336, %s352
      %p354 = scmp.eq.s32.totalorder %s30, 0
      %p355 = por %p353, %p354
      %s356 = ssub.s32 %s32, %s39
      %p357 = scmp.eq.s32.totalorder %s356, 0
      %s359 = sadd.s32 %s358, 1
      %s360 = scalar_select %p357, %s358, %s359
      %p363 = pneg %p357
      %p364 = scmp.eq.s32.totalorder %s24, 1
      %p365 = por %p363, %p364
      %p366 = scmp.ne.s32.totalorder %s358, %s361
      %p367 = scmp.eq.s32.totalorder %s24, 0
      %p368 = por %p366, %p367
      %p369 = scmp.ne.s32.totalorder %s358, %s361
      %p370 = scmp.eq.s32.totalorder %s29, 1
      %p371 = por %p369, %p370
      %p372 = scmp.ne.s32.totalorder %s361, %s362
      %p373 = scmp.eq.s32.totalorder %s29, 0
      %p374 = por %p372, %p373
      %p375 = scmp.ne.s32.totalorder %s361, %s362
      %p376 = scmp.eq.s32.totalorder %s30, 1
      %p377 = por %p375, %p376
      %p379 = scmp.ne.s32.totalorder %s362, %s378
      %p380 = scmp.eq.s32.totalorder %s30, 0
      %p381 = por %p379, %p380
      %s383 = sadd.s32 %s382, 1
      %p386 = scmp.eq.s32.totalorder %s24, 1
      %p387 = scmp.ne.s32.totalorder %s382, %s384
      %p388 = scmp.eq.s32.totalorder %s24, 0
      %p389 = por %p387, %p388
      %p390 = scmp.ne.s32.totalorder %s382, %s384
      %p391 = scmp.eq.s32.totalorder %s29, 1
      %p392 = por %p390, %p391
      %p393 = scmp.ne.s32.totalorder %s384, %s385
      %p394 = scmp.eq.s32.totalorder %s29, 0
      %p395 = por %p393, %p394
      %p396 = scmp.ne.s32.totalorder %s384, %s385
      %p397 = scmp.eq.s32.totalorder %s30, 1
      %p398 = por %p396, %p397
      %p400 = scmp.ne.s32.totalorder %s385, %s399
      %p401 = scmp.eq.s32.totalorder %s30, 0
      %p402 = por %p400, %p401
      %s404 = sadd.s32 %s403, 1
      %p407 = scmp.eq.s32.totalorder %s24, 1
      %p408 = scmp.ne.s32.totalorder %s403, %s405
      %p409 = scmp.eq.s32.totalorder %s24, 0
      %p410 = por %p408, %p409
      %p411 = scmp.ne.s32.totalorder %s403, %s405
      %p412 = scmp.eq.s32.totalorder %s29, 1
      %p413 = por %p411, %p412
      %p414 = scmp.ne.s32.totalorder %s405, %s406
      %p415 = scmp.eq.s32.totalorder %s29, 0
      %p416 = por %p414, %p415
      %p417 = scmp.ne.s32.totalorder %s405, %s406
      %p418 = scmp.eq.s32.totalorder %s30, 1
      %p419 = por %p417, %p418
      %p421 = scmp.ne.s32.totalorder %s406, %s420
      %p422 = scmp.eq.s32.totalorder %s30, 0
      %p423 = por %p421, %p422
      %s425 = sadd.s32 %s424, 1
      %p428 = scmp.eq.s32.totalorder %s24, 1
      %p429 = scmp.ne.s32.totalorder %s424, %s426
      %p430 = scmp.eq.s32.totalorder %s24, 0
      %p431 = por %p429, %p430
      %p432 = scmp.ne.s32.totalorder %s424, %s426
      %p433 = scmp.eq.s32.totalorder %s29, 1
      %p434 = por %p432, %p433
      %p435 = scmp.ne.s32.totalorder %s426, %s427
      %p436 = scmp.eq.s32.totalorder %s29, 0
      %p437 = por %p435, %p436
      %p438 = scmp.ne.s32.totalorder %s426, %s427
      %p439 = scmp.eq.s32.totalorder %s30, 1
      %p440 = por %p438, %p439
      %p442 = scmp.ne.s32.totalorder %s427, %s441
      %p443 = scmp.eq.s32.totalorder %s30, 0
      %p444 = por %p442, %p443
      %s446 = sadd.s32 %s445, 1
      %p449 = scmp.eq.s32.totalorder %s24, 1
      %p450 = scmp.ne.s32.totalorder %s445, %s447
      %p451 = scmp.eq.s32.totalorder %s24, 0
      %p452 = por %p450, %p451
      %p453 = scmp.ne.s32.totalorder %s445, %s447
      %p454 = scmp.eq.s32.totalorder %s29, 1
      %p455 = por %p453, %p454
      %p456 = scmp.ne.s32.totalorder %s447, %s448
      %p457 = scmp.eq.s32.totalorder %s29, 0
      %p458 = por %p456, %p457
      %p459 = scmp.ne.s32.totalorder %s447, %s448
      %p460 = scmp.eq.s32.totalorder %s30, 1
      %p461 = por %p459, %p460
      %p463 = scmp.ne.s32.totalorder %s448, %s462
      %p464 = scmp.eq.s32.totalorder %s30, 0
      %p465 = por %p463, %p464
      %s466 = ssub.s32 %s31, %s43
      %p467 = scmp.eq.s32.totalorder %s466, 0
      %s469 = sadd.s32 %s468, 1
      %s470 = scalar_select %p467, %s468, %s469
      %p473 = pneg %p467
      %p474 = scmp.eq.s32.totalorder %s24, 1
      %p475 = por %p473, %p474
      %p476 = scmp.ne.s32.totalorder %s468, %s471
      %p477 = scmp.eq.s32.totalorder %s24, 0
      %p478 = por %p476, %p477
      %p479 = scmp.ne.s32.totalorder %s468, %s471
      %p480 = scmp.eq.s32.totalorder %s29, 1
      %p481 = por %p479, %p480
      %p482 = scmp.ne.s32.totalorder %s471, %s472
      %p483 = scmp.eq.s32.totalorder %s29, 0
      %p484 = por %p482, %p483
      %p485 = scmp.ne.s32.totalorder %s471, %s472
      %p486 = scmp.eq.s32.totalorder %s30, 1
      %p487 = por %p485, %p486
      %p489 = scmp.ne.s32.totalorder %s472, %s488
      %p490 = scmp.eq.s32.totalorder %s30, 0
      %p491 = por %p489, %p490
      %p492 = scmp.le.s32.totalorder 1, %s24
      %p493 = scmp.lt.s32.totalorder %s24, 3
      %p494 = pnand %p492, %p493
      %p495 = pneg %p494
      // Predicated region
      $region9: #{transformer_forward.1} parent=5 // pred_check
        _
      $region10: #{transformer_forward.1} parent=5 // pred_check_branch
        %497 = sbr.rel (%p494) target = $region12
      $region11: #{transformer_forward.1} parent=5 // pred_region
        %s498 = ssub.s32 %s24, 1
        // Predicated region
        $region13: #{transformer_forward.1} parent=11 // pred_check
          %p499 = pneg %p62
        $region14: #{transformer_forward.1} parent=11 // pred_check_branch
          %501 = sbr.rel (%p499) target = $region16
        $region15: #{transformer_forward.1} parent=11 // pred_region
          %s502 = smul.u32 2, %s33
          %p503 = scmp.lt.s32.totalorder %s502, 1
          %s504 = scalar_select %p503, %s502, 1
          %s505 = smul.addr %s504, 8
          %s506 = scalar_lea.vmem %s0, %s505
          %s507 = smul.u32 2, %s33
        $region16: #{transformer_forward.1} parent=11 // pred_fallthru
          _
        // Predicated region
        $region17: #{transformer_forward.1} parent=11 // pred_check
          %p508 = pneg %p395
        $region18: #{transformer_forward.1} parent=11 // pred_check_branch
          %510 = sbr.rel (%p508) target = $region20
        $region19: #{transformer_forward.1} parent=11 // pred_region
          _
        $region20: #{transformer_forward.1} parent=11 // pred_fallthru
          _
        // Predicated region
        $region21: #{transformer_forward.1} parent=11 // pred_check
          %p511 = pneg %p416
        $region22: #{transformer_forward.1} parent=11 // pred_check_branch
          %513 = sbr.rel (%p511) target = $region24
        $region23: #{transformer_forward.1} parent=11 // pred_region
          _
        $region24: #{transformer_forward.1} parent=11 // pred_fallthru
          _
        // Predicated region
        $region25: #{transformer_forward.1} parent=11 // pred_check
          %p514 = pneg %p437
        $region26: #{transformer_forward.1} parent=11 // pred_check_branch
          %516 = sbr.rel (%p514) target = $region28
        $region27: #{transformer_forward.1} parent=11 // pred_region
          _
        $region28: #{transformer_forward.1} parent=11 // pred_fallthru
          _
        // Predicated region
        $region29: #{transformer_forward.1} parent=11 // pred_check
          %p517 = pneg %p458
        $region30: #{transformer_forward.1} parent=11 // pred_check_branch
          %519 = sbr.rel (%p517) target = $region32
        $region31: #{transformer_forward.1} parent=11 // pred_region
          _
        $region32: #{transformer_forward.1} parent=11 // pred_fallthru
          _
      $region12: #{transformer_forward.1} parent=5 // pred_fallthru
        _
      %p520 = scmp.lt.s32.totalorder %s24, 2
      // Predicated region
      $region33: #{transformer_forward.1} parent=5 // pred_check
        %p521 = pneg %p520
      $region34: #{transformer_forward.1} parent=5 // pred_check_branch
        %523 = sbr.rel (%p521) target = $region36
      $region35: #{transformer_forward.1} parent=5 // pred_region
        // Predicated region
        $region37: #{transformer_forward.1} parent=35 // pred_check
          %p524 = pneg %p82
        $region38: #{transformer_forward.1} parent=35 // pred_check_branch
          %526 = sbr.rel (%p524) target = $region40
        $region39: #{transformer_forward.1} parent=35 // pred_region
          %p527 = scmp.lt.s32.totalorder %s32, 1
          %s528 = scalar_select %p527, %s32, 1
          %s529 = scalar_lea.vmem %s1, %s528
        $region40: #{transformer_forward.1} parent=35 // pred_fallthru
          _
        // Predicated region
        $region41: #{transformer_forward.1} parent=35 // pred_check
          %p530 = pneg %p108
        $region42: #{transformer_forward.1} parent=35 // pred_check_branch
          %532 = sbr.rel (%p530) target = $region44
        $region43: #{transformer_forward.1} parent=35 // pred_region
          %p533 = scmp.lt.s32.totalorder %s32, 1
          %s534 = scalar_select %p533, %s32, 1
          %s535 = scalar_lea.vmem %s2, %s534
        $region44: #{transformer_forward.1} parent=35 // pred_fallthru
          _
        // Predicated region
        $region45: #{transformer_forward.1} parent=35 // pred_check
          %p536 = pneg %p134
        $region46: #{transformer_forward.1} parent=35 // pred_check_branch
          %538 = sbr.rel (%p536) target = $region48
        $region47: #{transformer_forward.1} parent=35 // pred_region
          %p539 = scmp.lt.s32.totalorder %s32, 1
          %s540 = scalar_select %p539, %s32, 1
          %s541 = smul.addr %s540, 4
          %s542 = smul.addr %s541, 4
          %s543 = scalar_lea.vmem %s3, %s542
        $region48: #{transformer_forward.1} parent=35 // pred_fallthru
          _
        // Predicated region
        $region49: #{transformer_forward.1} parent=35 // pred_check
          %p544 = pneg %p160
        $region50: #{transformer_forward.1} parent=35 // pred_check_branch
          %546 = sbr.rel (%p544) target = $region52
        $region51: #{transformer_forward.1} parent=35 // pred_region
          %p547 = scmp.lt.s32.totalorder %s32, 1
          %s548 = scalar_select %p547, %s32, 1
          %s549 = scalar_lea.vmem %s4, %s548
        $region52: #{transformer_forward.1} parent=35 // pred_fallthru
          _
        // Predicated region
        $region53: #{transformer_forward.1} parent=35 // pred_check
          %p550 = pneg %p186
        $region54: #{transformer_forward.1} parent=35 // pred_check_branch
          %552 = sbr.rel (%p550) target = $region56
        $region55: #{transformer_forward.1} parent=35 // pred_region
          %p553 = scmp.lt.s32.totalorder %s32, 1
          %s554 = scalar_select %p553, %s32, 1
          %s555 = smul.addr %s554, 4
          %s556 = smul.addr %s555, 4
          %s557 = scalar_lea.vmem %s5, %s556
        $region56: #{transformer_forward.1} parent=35 // pred_fallthru
          _
        // Predicated region
        $region57: #{transformer_forward.1} parent=35 // pred_check
          %p558 = pneg %p212
        $region58: #{transformer_forward.1} parent=35 // pred_check_branch
          %560 = sbr.rel (%p558) target = $region60
        $region59: #{transformer_forward.1} parent=35 // pred_region
          %p561 = scmp.lt.s32.totalorder %s32, 1
          %s562 = scalar_select %p561, %s32, 1
          %s563 = scalar_lea.vmem %s6, %s562
        $region60: #{transformer_forward.1} parent=35 // pred_fallthru
          _
        // Predicated region
        $region61: #{transformer_forward.1} parent=35 // pred_check
          %p564 = pneg %p238
        $region62: #{transformer_forward.1} parent=35 // pred_check_branch
          %566 = sbr.rel (%p564) target = $region64
        $region63: #{transformer_forward.1} parent=35 // pred_region
          %p567 = scmp.lt.s32.totalorder %s32, 1
          %s568 = scalar_select %p567, %s32, 1
          %s569 = scalar_lea.vmem %s7, %s568
        $region64: #{transformer_forward.1} parent=35 // pred_fallthru
          _
        // Predicated region
        $region65: #{transformer_forward.1} parent=35 // pred_check
          %p570 = pneg %p264
        $region66: #{transformer_forward.1} parent=35 // pred_check_branch
          %572 = sbr.rel (%p570) target = $region68
        $region67: #{transformer_forward.1} parent=35 // pred_region
          %p573 = scmp.lt.s32.totalorder %s32, 1
          %s574 = scalar_select %p573, %s32, 1
          %s575 = scalar_lea.vmem %s8, %s574
        $region68: #{transformer_forward.1} parent=35 // pred_fallthru
          _
        // Predicated region
        $region69: #{transformer_forward.1} parent=35 // pred_check
          %p576 = pneg %p290
        $region70: #{transformer_forward.1} parent=35 // pred_check_branch
          %578 = sbr.rel (%p576) target = $region72
        $region71: #{transformer_forward.1} parent=35 // pred_region
          %p579 = scmp.lt.s32.totalorder %s32, 1
          %s580 = scalar_select %p579, %s32, 1
          %s581 = smul.addr %s580, 4
          %s582 = smul.addr %s581, 4
          %s583 = scalar_lea.vmem %s9, %s582
        $region72: #{transformer_forward.1} parent=35 // pred_fallthru
          _
        // Predicated region
        $region73: #{transformer_forward.1} parent=35 // pred_check
          %p584 = pneg %p316
        $region74: #{transformer_forward.1} parent=35 // pred_check_branch
          %586 = sbr.rel (%p584) target = $region76
        $region75: #{transformer_forward.1} parent=35 // pred_region
          %p587 = scmp.lt.s32.totalorder %s32, 1
          %s588 = scalar_select %p587, %s32, 1
          %s589 = scalar_lea.vmem %s10, %s588
        $region76: #{transformer_forward.1} parent=35 // pred_fallthru
          _
        // Predicated region
        $region77: #{transformer_forward.1} parent=35 // pred_check
          %p590 = pneg %p342
        $region78: #{transformer_forward.1} parent=35 // pred_check_branch
          %592 = sbr.rel (%p590) target = $region80
        $region79: #{transformer_forward.1} parent=35 // pred_region
          %p593 = scmp.lt.s32.totalorder %s32, 1
          %s594 = scalar_select %p593, %s32, 1
          %s595 = smul.addr %s594, 8
          %s596 = smul.addr %s595, 4
          %s597 = scalar_lea.vmem %s11, %s596
        $region80: #{transformer_forward.1} parent=35 // pred_fallthru
          _
        // Predicated region
        $region81: #{transformer_forward.1} parent=35 // pred_check
          %p598 = pneg %p368
        $region82: #{transformer_forward.1} parent=35 // pred_check_branch
          %600 = sbr.rel (%p598) target = $region84
        $region83: #{transformer_forward.1} parent=35 // pred_region
          %p601 = scmp.lt.s32.totalorder %s32, 1
          %s602 = scalar_select %p601, %s32, 1
          %s603 = scalar_lea.vmem %s12, %s602
        $region84: #{transformer_forward.1} parent=35 // pred_fallthru
          _
      $region36: #{transformer_forward.1} parent=5 // pred_fallthru
        _
      %p604 = scmp.le.s32.totalorder 1, %s24
      %p605 = scmp.lt.s32.totalorder %s24, 3
      %p606 = pnand %p604, %p605
      %p607 = pneg %p606
      // Predicated region
      $region85: #{transformer_forward.1} parent=5 // pred_check
        _
      $region86: #{transformer_forward.1} parent=5 // pred_check_branch
        %609 = sbr.rel (%p606) target = $region88
      $region87: #{transformer_forward.1} parent=5 // pred_region
        %s610 = ssub.s32 %s24, 1
        %s611 = smul.u32 2, %s33
        %p612 = scmp.lt.s32.totalorder %s611, 1
        %s613 = scalar_select %p612, %s611, 1
        %s614 = smul.addr %s613, 8
        %s615 = scalar_lea.vmem %s0, %s614
        %p616 = pneg %p62
        %p617 = pneg %p59
        %p618 = scmp.lt.s32.totalorder %s34, 1
        %s619 = scalar_select %p618, %s34, 1
        %s620 = scalar_lea.vmem %s1, %s619
        %p621 = pneg %p88
        %p622 = pneg %p85
        %p623 = scmp.lt.s32.totalorder %s34, 1
        %s624 = scalar_select %p623, %s34, 1
        %s625 = scalar_lea.vmem %s2, %s624
        %p626 = pneg %p114
        %p627 = pneg %p111
        %p628 = scmp.lt.s32.totalorder %s34, 1
        %s629 = scalar_select %p628, %s34, 1
        %s630 = smul.addr %s629, 4
        %s631 = smul.addr %s630, 4
        %s632 = scalar_lea.vmem %s3, %s631
        %p633 = pneg %p140
        %p634 = pneg %p137
        %p635 = scmp.lt.s32.totalorder %s34, 1
        %s636 = scalar_select %p635, %s34, 1
        %s637 = scalar_lea.vmem %s4, %s636
        %p638 = pneg %p166
        %p639 = pneg %p163
        %p640 = scmp.lt.s32.totalorder %s34, 1
        %s641 = scalar_select %p640, %s34, 1
        %s642 = smul.addr %s641, 4
        %s643 = smul.addr %s642, 4
        %s644 = scalar_lea.vmem %s5, %s643
        %p645 = pneg %p192
        %p646 = pneg %p189
        %p647 = scmp.lt.s32.totalorder %s34, 1
        %s648 = scalar_select %p647, %s34, 1
        %s649 = scalar_lea.vmem %s6, %s648
        %p650 = pneg %p218
        %p651 = pneg %p215
        %p652 = scmp.lt.s32.totalorder %s34, 1
        %s653 = scalar_select %p652, %s34, 1
        %s654 = scalar_lea.vmem %s7, %s653
        %p655 = pneg %p244
        %p656 = pneg %p241
        %p657 = scmp.lt.s32.totalorder %s34, 1
        %s658 = scalar_select %p657, %s34, 1
        %s659 = scalar_lea.vmem %s8, %s658
        %p660 = pneg %p270
        %p661 = pneg %p267
        %p662 = scmp.lt.s32.totalorder %s34, 1
        %s663 = scalar_select %p662, %s34, 1
        %s664 = smul.addr %s663, 4
        %s665 = smul.addr %s664, 4
        %s666 = scalar_lea.vmem %s9, %s665
        %p667 = pneg %p296
        %p668 = pneg %p293
        %p669 = scmp.lt.s32.totalorder %s34, 1
        %s670 = scalar_select %p669, %s34, 1
        %s671 = scalar_lea.vmem %s10, %s670
        %p672 = pneg %p322
        %p673 = pneg %p319
        %p674 = scmp.lt.s32.totalorder %s34, 1
        %s675 = scalar_select %p674, %s34, 1
        %s676 = smul.addr %s675, 8
        %s677 = smul.addr %s676, 4
        %s678 = scalar_lea.vmem %s11, %s677
        %p679 = pneg %p348
        %p680 = pneg %p345
        %p681 = scmp.lt.s32.totalorder %s34, 1
        %s682 = scalar_select %p681, %s34, 1
        %s683 = scalar_lea.vmem %s12, %s682
        %p684 = pneg %p374
        %p685 = pneg %p371
        %p686 = pneg %p395
        %p687 = pneg %p392
        %p688 = pneg %p416
        %p689 = pneg %p413
        %p690 = pneg %p437
        %p691 = pneg %p434
        %p692 = pneg %p458
        %p693 = pneg %p455
        %p694 = pneg %p484
        %p695 = pneg %p481
        %s696 = smul.u32 2, %s33
        %p697 = scmp.lt.s32.totalorder %s696, 1
        %s698 = scalar_select %p697, %s696, 1
        %s699 = smul.addr %s698, 8
        %s700 = scalar_lea.vmem %s0, %s699
        %s701 = smul.u32 2, %s33
        %p702 = scmp.lt.s32.totalorder %s34, 1
        %s703 = scalar_select %p702, %s34, 1
        %s704 = scalar_lea.vmem %s1, %s703
        %p705 = scmp.lt.s32.totalorder %s34, 1
        %s706 = scalar_select %p705, %s34, 1
        %s707 = scalar_lea.vmem %s2, %s706
        %p708 = scmp.lt.s32.totalorder %s34, 1
        %s709 = scalar_select %p708, %s34, 1
        %s710 = smul.addr %s709, 4
        %s711 = smul.addr %s710, 4
        %s712 = scalar_lea.vmem %s3, %s711
        %p713 = scmp.lt.s32.totalorder %s34, 1
        %s714 = scalar_select %p713, %s34, 1
        %s715 = scalar_lea.vmem %s4, %s714
        %p716 = scmp.lt.s32.totalorder %s34, 1
        %s717 = scalar_select %p716, %s34, 1
        %s718 = smul.addr %s717, 4
        %s719 = smul.addr %s718, 4
        %s720 = scalar_lea.vmem %s5, %s719
        %p721 = scmp.lt.s32.totalorder %s34, 1
        %s722 = scalar_select %p721, %s34, 1
        %s723 = scalar_lea.vmem %s6, %s722
        %p724 = scmp.lt.s32.totalorder %s34, 1
        %s725 = scalar_select %p724, %s34, 1
        %s726 = scalar_lea.vmem %s7, %s725
        %p727 = scmp.lt.s32.totalorder %s34, 1
        %s728 = scalar_select %p727, %s34, 1
        %s729 = scalar_lea.vmem %s8, %s728
        %p730 = scmp.lt.s32.totalorder %s34, 1
        %s731 = scalar_select %p730, %s34, 1
        %s732 = smul.addr %s731, 4
        %s733 = smul.addr %s732, 4
        %s734 = scalar_lea.vmem %s9, %s733
        %p735 = scmp.lt.s32.totalorder %s34, 1
        %s736 = scalar_select %p735, %s34, 1
        %s737 = scalar_lea.vmem %s10, %s736
        %p738 = scmp.lt.s32.totalorder %s34, 1
        %s739 = scalar_select %p738, %s34, 1
        %s740 = smul.addr %s739, 8
        %s741 = smul.addr %s740, 4
        %s742 = scalar_lea.vmem %s11, %s741
        %p743 = scmp.lt.s32.totalorder %s34, 1
        %s744 = scalar_select %p743, %s34, 1
        %s745 = scalar_lea.vmem %s12, %s744
        %s746 = smul.u32 2, %s33
        %p748 = scmp.eq.s32.totalorder %s34, 0
        // Predicated region
        $region89: #{transformer_forward.1} parent=87 // pred_check
          %p749 = pneg %p748
        $region90: #{transformer_forward.1} parent=87 // pred_check_branch
          %751 = sbr.rel (%p749) target = $region92
        $region91: #{transformer_forward.1} parent=87 // pred_region
          %v752 = vld [vmem:[%s700] sm:$0xff]
          %v753 = vld [vmem:[%s700 + $0x8] sm:$0xff]
          %vm754 = vcmask 261120
          %755 = vst.msk [vmem:[#allocation2] sm:$0xff] %vm754, %v752
          %756 = vst.msk [vmem:[#allocation2 + $0x8] sm:$0xff] %vm754, %v753
        $region92: #{transformer_forward.1} parent=87 // pred_fallthru
          _
        %v757 = vld [vmem:[#allocation2] sm:$0xff]
        %v758 = vld [vmem:[#allocation2 + $0x8] sm:$0xff]
        %v759 = vld [vmem:[%s704] sm:$0x1]
        %v760 = vld [vmem:[%s707] sm:$0x1]
        %vm761 = vcmask 261120
        %v762 = vsel %vm761, %v757, 0.0
        %763 = vadd.xlane.f32.xlu0 %v762
        %v764 = vpop.xlane.xlu0 %763
        %v765 = vsel %vm761, %v758, 0.0
        %766 = vadd.xlane.f32.xlu0 %v765
        %v767 = vpop.xlane.xlu0 %766
        %v768 = vrcp.pop 32.0
        %v769 = vmul.f32 %v764, %v768
        %v770 = vmul.f32 %v767, %v768
        %v771 = vsub.f32 %v757, %v769
        %v772 = vsub.f32 %v758, %v770
        %v773 = vmul.f32 %v771, %v771
        %v774 = vmul.f32 %v772, %v772
        %v775 = vsel %vm761, %v773, 0.0
        %776 = vadd.xlane.f32.xlu0 %v775
        %v777 = vpop.xlane.xlu0 %776
        %v778 = vsel %vm761, %v774, 0.0
        %779 = vadd.xlane.f32.xlu0 %v778
        %v780 = vpop.xlane.xlu0 %779
        %v781 = vmul.f32 %v777, %v768
        %v782 = vmul.f32 %v780, %v768
        %v783 = vadd.f32 %v781, 1e-05
        %v784 = vadd.f32 %v782, 1e-05
        %v785 = vrsqrt.pop %v783
        %v786 = vrsqrt.pop %v784
        %v787 = vmul.f32 %v771, %v785
        %v788 = vmul.f32 %v772, %v786
        %v790 = vlaneseq
        %v791 = vshrl.u32 %v790, 7
        %v792 = vsub.s32 0, %v791
        %v793 = vrot.slane %v759, %v792
        %v795 = vmul.f32 %v787, %v793
        %v796 = vmul.f32 %v788, %v793
        %v798 = vlaneseq
        %v799 = vshrl.u32 %v798, 7
        %v800 = vsub.s32 0, %v799
        %v801 = vrot.slane %v760, %v800
        %v803 = vadd.f32 %v795, %v801
        %v804 = vadd.f32 %v796, %v801
        %v805 = vpack.c.bf16 %v804, %v803
        %v806 = vld [vmem:[%s712] sm:$0xf]
        %v807 = vld [vmem:[%s712 + $0x4] sm:$0xf]
        %v808 = vld [vmem:[%s712 + $0x8] sm:$0xf]
        %v809 = vld [vmem:[%s712 + $0xc] sm:$0xf]
        %v810 = vld [vmem:[%s715] sm:$0x1]
        %v812 = vlaneseq
        %v813 = vshrl.u32 %v812, 7
        %v814 = vsub.s32 0, %v813
        %v815 = vrot.slane %v810, %v814
        %v821 = vunpack.c.l.b16 %v806
        %v822 = vunpack.c.l.b16 %v807
        %v823 = vunpack.c.l.b16 %v808
        %v824 = vunpack.c.l.b16 %v809
        %v825 = vpack.c.b16 %v822, %v821
        %v826 = vpack.c.b16 %v824, %v823
        %v830 = vsel %vm761, %v805, 0
        %832 = vmatprep.subr.bf16.mxu0 0
        %833 = vmatpush1.bf16.msra.mxu0 %v825
        %834 = vmatprep.subr.bf16.mxu0 0
        %835 = vmatpush1.bf16.msra.mxu0 %v826
        %836 = vmatprep.subr.bf16.mxu0 0
        %837 = vmatpush1.bf16.msra.mxu0 0
        %838 = vmatprep.subr.bf16.mxu0 0
        %839 = vmatpush1.bf16.msra.mxu0 0
        %840 = vmatprep.subr.bf16.mxu0 0
        %841 = vmatpush1.bf16.msra.mxu0 0
        %842 = vmatprep.subr.bf16.mxu0 0
        %843 = vmatpush1.bf16.msra.mxu0 0
        %844 = vmatprep.subr.bf16.mxu0 0
        %845 = vmatpush1.bf16.msra.mxu0 0
        %846 = vmatprep.subr.bf16.mxu0 0
        %847 = vmatpush1.bf16.msra.mxu0 0
        %848 = vmatprep.subr.bf16.mxu0 0
        %849 = vmatpush1.bf16.msra.mxu0 0
        %850 = vmatprep.subr.bf16.mxu0 0
        %851 = vmatpush1.bf16.msra.mxu0 0
        %852 = vmatprep.subr.bf16.mxu0 0
        %853 = vmatpush1.bf16.msra.mxu0 0
        %854 = vmatprep.subr.bf16.mxu0 0
        %855 = vmatpush1.bf16.msra.mxu0 0
        %856 = vmatprep.subr.bf16.mxu0 0
        %857 = vmatpush1.bf16.msra.mxu0 0
        %858 = vmatprep.subr.bf16.mxu0 0
        %859 = vmatpush1.bf16.msra.mxu0 0
        %860 = vmatprep.subr.bf16.mxu0 0
        %861 = vmatpush1.bf16.msra.mxu0 0
        %862 = vmatprep.subr.bf16.mxu0 0
        %863 = vmatpush1.bf16.msra.mxu0 0
        %864 = vmatprep.mubr.bf16.mxu0 0
        %865 = vmatmul.mubr.bf16.gmra.mrb[0].mxu0 %v830
        %v866 = vpop.f32.mrb[0].mxu0
        %v867 = vadd.f32 %v815, %v866
        %v868 = vpop.f32.mrb[0].mxu0
        %v869 = vpop.f32.mrb[0].mxu0
        %v870 = vadd.f32 %v815, %v869
        %v871 = vpop.f32.mrb[0].mxu0
        %872 = vdwg.mxu0
        %v873 = vlaneseq
        %v874 = vshrl.u32 %v873, 7
        %v875 = vlaneseq
        %v876 = vand.u32 %v875, 127
        %vm877 = vcmp.gt.s32.totalorder %v876, %v874
        %v878 = vld [vmem:[%s720] sm:$0xf]
        %v879 = vld [vmem:[%s720 + $0x4] sm:$0xf]
        %v880 = vld [vmem:[%s720 + $0x8] sm:$0xf]
        %v881 = vld [vmem:[%s720 + $0xc] sm:$0xf]
        %v882 = vpack.c.bf16 %v867, %v867
        %v883 = vpack.c.bf16 %v870, %v870
        %885 = vrot.lane.b32.xlu0 %v882, 96
        %v886 = vpop.permute.xlu0 %885
        %vm887 = vcmask 64512
        %v889 = vsel %vm887, %v882, 0
        %v892 = vsel %vm887, %v886, 0
        %894 = vmatprep.subr.bf16.mxu0 0
        %895 = vmatpush1.bf16.xpose.msra.mxu0 %v892
        %896 = vmatprep.subr.bf16.mxu0 0
        %897 = vmatpush1.bf16.xpose.msra.mxu0 0
        %898 = vmatprep.subr.bf16.mxu0 0
        %899 = vmatpush1.bf16.xpose.msra.mxu0 0
        %900 = vmatprep.subr.bf16.mxu0 0
        %901 = vmatpush1.bf16.xpose.msra.mxu0 0
        %902 = vmatprep.subr.bf16.mxu0 0
        %903 = vmatpush1.bf16.xpose.msra.mxu0 0
        %904 = vmatprep.subr.bf16.mxu0 0
        %905 = vmatpush1.bf16.xpose.msra.mxu0 0
        %906 = vmatprep.subr.bf16.mxu0 0
        %907 = vmatpush1.bf16.xpose.msra.mxu0 0
        %908 = vmatprep.subr.bf16.mxu0 0
        %909 = vmatpush1.bf16.xpose.msra.mxu0 0
        %910 = vmatprep.subr.bf16.mxu0 0
        %911 = vmatpush1.bf16.xpose.msra.mxu0 0
        %912 = vmatprep.subr.bf16.mxu0 0
        %913 = vmatpush1.bf16.xpose.msra.mxu0 0
        %914 = vmatprep.subr.bf16.mxu0 0
        %915 = vmatpush1.bf16.xpose.msra.mxu0 0
        %916 = vmatprep.subr.bf16.mxu0 0
        %917 = vmatpush1.bf16.xpose.msra.mxu0 0
        %918 = vmatprep.subr.bf16.mxu0 0
        %919 = vmatpush1.bf16.xpose.msra.mxu0 0
        %920 = vmatprep.subr.bf16.mxu0 0
        %921 = vmatpush1.bf16.xpose.msra.mxu0 0
        %922 = vmatprep.subr.bf16.mxu0 0
        %923 = vmatpush1.bf16.xpose.msra.mxu0 0
        %924 = vmatprep.subr.bf16.mxu0 0
        %925 = vmatpush1.bf16.xpose.msra.mxu0 0
        %926 = vmatprep.mubr.bf16.mxu0 0
        %927 = vmatmul.mubr.bf16.gmra.mrb[0].mxu0 %v889
        %v928 = vpop.f32.mrb[0].mxu0
        %v929 = vadd.f32 0.0, %v928
        %v930 = vpop.f32.mrb[0].mxu0
        %v931 = vpop.f32.mrb[0].mxu0
        %v932 = vpop.f32.mrb[0].mxu0
        %933 = vdwg.mxu0
        %935 = vrot.lane.b32.xlu0 %v883, 96
        %v936 = vpop.permute.xlu0 %935
        %v938 = vsel %vm887, %v883, 0
        %v941 = vsel %vm887, %v936, 0
        %943 = vmatprep.subr.bf16.mxu0 0
        %944 = vmatpush1.bf16.xpose.msra.mxu0 %v941
        %945 = vmatprep.subr.bf16.mxu0 0
        %946 = vmatpush1.bf16.xpose.msra.mxu0 0
        %947 = vmatprep.subr.bf16.mxu0 0
        %948 = vmatpush1.bf16.xpose.msra.mxu0 0
        %949 = vmatprep.subr.bf16.mxu0 0
        %950 = vmatpush1.bf16.xpose.msra.mxu0 0
        %951 = vmatprep.subr.bf16.mxu0 0
        %952 = vmatpush1.bf16.xpose.msra.mxu0 0
        %953 = vmatprep.subr.bf16.mxu0 0
        %954 = vmatpush1.bf16.xpose.msra.mxu0 0
        %955 = vmatprep.subr.bf16.mxu0 0
        %956 = vmatpush1.bf16.xpose.msra.mxu0 0
        %957 = vmatprep.subr.bf16.mxu0 0
        %958 = vmatpush1.bf16.xpose.msra.mxu0 0
        %959 = vmatprep.subr.bf16.mxu0 0
        %960 = vmatpush1.bf16.xpose.msra.mxu0 0
        %961 = vmatprep.subr.bf16.mxu0 0
        %962 = vmatpush1.bf16.xpose.msra.mxu0 0
        %963 = vmatprep.subr.bf16.mxu0 0
        %964 = vmatpush1.bf16.xpose.msra.mxu0 0
        %965 = vmatprep.subr.bf16.mxu0 0
        %966 = vmatpush1.bf16.xpose.msra.mxu0 0
        %967 = vmatprep.subr.bf16.mxu0 0
        %968 = vmatpush1.bf16.xpose.msra.mxu0 0
        %969 = vmatprep.subr.bf16.mxu0 0
        %970 = vmatpush1.bf16.xpose.msra.mxu0 0
        %971 = vmatprep.subr.bf16.mxu0 0
        %972 = vmatpush1.bf16.xpose.msra.mxu0 0
        %973 = vmatprep.subr.bf16.mxu0 0
        %974 = vmatpush1.bf16.xpose.msra.mxu0 0
        %975 = vmatprep.mubr.bf16.mxu0 0
        %976 = vmatmul.mubr.bf16.gmra.mrb[0].mxu0 %v938
        %v977 = vpop.f32.mrb[0].mxu0
        %v978 = vadd.f32 0.0, %v977
        %v979 = vpop.f32.mrb[0].mxu0
        %v980 = vpop.f32.mrb[0].mxu0
        %v981 = vpop.f32.mrb[0].mxu0
        %982 = vdwg.mxu0
        %v983 = vsel %vm877, 1, 0
        %vm984 = vcmp.eq.s32.totalorder %v983, 1
        %v985 = vsel %vm984, -100000.0, %v929
        %v986 = vsel %vm984, -100000.0, %v978
        %v987 = vsel %vm887, %v985, -inf
        %988 = vmax.xlane.f32.xlu0 %v987
        %v989 = vpop.xlane.xlu0 %988
        %v990 = vsel %vm887, %v986, -inf
        %991 = vmax.xlane.f32.xlu0 %v990
        %v992 = vpop.xlane.xlu0 %991
        %v993 = vsub.f32 %v985, %v989
        %v994 = vsub.f32 %v986, %v992
        %v995 = vmul.f32 %v993, 1.442695
        %v996 = vpow.pop %v995
        %v997 = vmul.f32 %v994, 1.442695
        %v998 = vpow.pop %v997
        %v999 = vsel %vm887, %v996, 0.0
        %1000 = vadd.xlane.f32.xlu0 %v999
        %v1001 = vpop.xlane.xlu0 %1000
        %v1002 = vsel %vm887, %v998, 0.0
        %1003 = vadd.xlane.f32.xlu0 %v1002
        %v1004 = vpop.xlane.xlu0 %1003
        %v1005 = vrcp.pop %v1001
        %v1006 = vmul.f32 %v996, %v1005
        %v1007 = vrcp.pop %v1004
        %v1008 = vmul.f32 %v998, %v1007
        %v1009 = vpack.c.bf16 %v1006, %v1006
        %v1010 = vpack.c.bf16 %v1008, %v1008
        %1011 = vrot.lane.b32.xlu0 %v882, 64
        %v1012 = vpop.permute.xlu0 %1011
        %v1014 = vsel %vm887, %v1009, 0
        %vm1016 = vcmask 1043456
        %v1018 = vsel %vm1016, %v1012, 0
        %1020 = vmatprep.subr.bf16.mxu0 0
        %1021 = vmatpush1.bf16.msra.mxu0 %v1018
        %1022 = vmatprep.subr.bf16.mxu0 0
        %1023 = vmatpush1.bf16.msra.mxu0 0
        %1024 = vmatprep.subr.bf16.mxu0 0
        %1025 = vmatpush1.bf16.msra.mxu0 0
        %1026 = vmatprep.subr.bf16.mxu0 0
        %1027 = vmatpush1.bf16.msra.mxu0 0
        %1028 = vmatprep.subr.bf16.mxu0 0
        %1029 = vmatpush1.bf16.msra.mxu0 0
        %1030 = vmatprep.subr.bf16.mxu0 0
        %1031 = vmatpush1.bf16.msra.mxu0 0
        %1032 = vmatprep.subr.bf16.mxu0 0
        %1033 = vmatpush1.bf16.msra.mxu0 0
        %1034 = vmatprep.subr.bf16.mxu0 0
        %1035 = vmatpush1.bf16.msra.mxu0 0
        %1036 = vmatprep.subr.bf16.mxu0 0
        %1037 = vmatpush1.bf16.msra.mxu0 0
        %1038 = vmatprep.subr.bf16.mxu0 0
        %1039 = vmatpush1.bf16.msra.mxu0 0
        %1040 = vmatprep.subr.bf16.mxu0 0
        %1041 = vmatpush1.bf16.msra.mxu0 0
        %1042 = vmatprep.subr.bf16.mxu0 0
        %1043 = vmatpush1.bf16.msra.mxu0 0
        %1044 = vmatprep.subr.bf16.mxu0 0
        %1045 = vmatpush1.bf16.msra.mxu0 0
        %1046 = vmatprep.subr.bf16.mxu0 0
        %1047 = vmatpush1.bf16.msra.mxu0 0
        %1048 = vmatprep.subr.bf16.mxu0 0
        %1049 = vmatpush1.bf16.msra.mxu0 0
        %1050 = vmatprep.subr.bf16.mxu0 0
        %1051 = vmatpush1.bf16.msra.mxu0 0
        %1052 = vmatprep.mubr.bf16.mxu0 0
        %1053 = vmatmul.mubr.bf16.gmra.mrb[0].mxu0 %v1014
        %v1054 = vpop.f32.mrb[0].mxu0
        %v1055 = vadd.f32 0.0, %v1054
        %v1056 = vpop.f32.mrb[0].mxu0
        %v1057 = vpop.f32.mrb[0].mxu0
        %v1058 = vpop.f32.mrb[0].mxu0
        %1059 = vdwg.mxu0
        %1060 = vrot.lane.b32.xlu0 %v883, 64
        %v1061 = vpop.permute.xlu0 %1060
        %v1063 = vsel %vm887, %v1010, 0
        %v1066 = vsel %vm1016, %v1061, 0
        %1068 = vmatprep.subr.bf16.mxu0 0
        %1069 = vmatpush1.bf16.msra.mxu0 %v1066
        %1070 = vmatprep.subr.bf16.mxu0 0
        %1071 = vmatpush1.bf16.msra.mxu0 0
        %1072 = vmatprep.subr.bf16.mxu0 0
        %1073 = vmatpush1.bf16.msra.mxu0 0
        %1074 = vmatprep.subr.bf16.mxu0 0
        %1075 = vmatpush1.bf16.msra.mxu0 0
        %1076 = vmatprep.subr.bf16.mxu0 0
        %1077 = vmatpush1.bf16.msra.mxu0 0
        %1078 = vmatprep.subr.bf16.mxu0 0
        %1079 = vmatpush1.bf16.msra.mxu0 0
        %1080 = vmatprep.subr.bf16.mxu0 0
        %1081 = vmatpush1.bf16.msra.mxu0 0
        %1082 = vmatprep.subr.bf16.mxu0 0
        %1083 = vmatpush1.bf16.msra.mxu0 0
        %1084 = vmatprep.subr.bf16.mxu0 0
        %1085 = vmatpush1.bf16.msra.mxu0 0
        %1086 = vmatprep.subr.bf16.mxu0 0
        %1087 = vmatpush1.bf16.msra.mxu0 0
        %1088 = vmatprep.subr.bf16.mxu0 0
        %1089 = vmatpush1.bf16.msra.mxu0 0
        %1090 = vmatprep.subr.bf16.mxu0 0
        %1091 = vmatpush1.bf16.msra.mxu0 0
        %1092 = vmatprep.subr.bf16.mxu0 0
        %1093 = vmatpush1.bf16.msra.mxu0 0
        %1094 = vmatprep.subr.bf16.mxu0 0
        %1095 = vmatpush1.bf16.msra.mxu0 0
        %1096 = vmatprep.subr.bf16.mxu0 0
        %1097 = vmatpush1.bf16.msra.mxu0 0
        %1098 = vmatprep.subr.bf16.mxu0 0
        %1099 = vmatpush1.bf16.msra.mxu0 0
        %1100 = vmatprep.mubr.bf16.mxu0 0
        %1101 = vmatmul.mubr.bf16.gmra.mrb[0].mxu0 %v1063
        %v1102 = vpop.f32.mrb[0].mxu0
        %v1103 = vadd.f32 0.0, %v1102
        %v1104 = vpop.f32.mrb[0].mxu0
        %v1105 = vpop.f32.mrb[0].mxu0
        %v1106 = vpop.f32.mrb[0].mxu0
        %1107 = vdwg.mxu0
        %v1108 = vpack.c.bf16 %v1103, %v1055
        %1109 = vrot.lane.b32.xlu0 %v882, 120
        %v1110 = vpop.permute.xlu0 %1109
        %1111 = vrot.lane.b32.xlu0 %v882, 88
        %v1112 = vpop.permute.xlu0 %1111
        %v1114 = vsel %vm887, %v1110, 0
        %v1117 = vsel %vm887, %v1112, 0
        %1119 = vmatprep.subr.bf16.mxu0 0
        %1120 = vmatpush1.bf16.xpose.msra.mxu0 %v1117
        %1121 = vmatprep.subr.bf16.mxu0 0
        %1122 = vmatpush1.bf16.xpose.msra.mxu0 0
        %1123 = vmatprep.subr.bf16.mxu0 0
        %1124 = vmatpush1.bf16.xpose.msra.mxu0 0
        %1125 = vmatprep.subr.bf16.mxu0 0
        %1126 = vmatpush1.bf16.xpose.msra.mxu0 0
        %1127 = vmatprep.subr.bf16.mxu0 0
        %1128 = vmatpush1.bf16.xpose.msra.mxu0 0
        %1129 = vmatprep.subr.bf16.mxu0 0
        %1130 = vmatpush1.bf16.xpose.msra.mxu0 0
        %1131 = vmatprep.subr.bf16.mxu0 0
        %1132 = vmatpush1.bf16.xpose.msra.mxu0 0
        %1133 = vmatprep.subr.bf16.mxu0 0
        %1134 = vmatpush1.bf16.xpose.msra.mxu0 0
        %1135 = vmatprep.subr.bf16.mxu0 0
        %1136 = vmatpush1.bf16.xpose.msra.mxu0 0
        %1137 = vmatprep.subr.bf16.mxu0 0
        %1138 = vmatpush1.bf16.xpose.msra.mxu0 0
        %1139 = vmatprep.subr.bf16.mxu0 0
        %1140 = vmatpush1.bf16.xpose.msra.mxu0 0
        %1141 = vmatprep.subr.bf16.mxu0 0
        %1142 = vmatpush1.bf16.xpose.msra.mxu0 0
        %1143 = vmatprep.subr.bf16.mxu0 0
        %1144 = vmatpush1.bf16.xpose.msra.mxu0 0
        %1145 = vmatprep.subr.bf16.mxu0 0
        %1146 = vmatpush1.bf16.xpose.msra.mxu0 0
        %1147 = vmatprep.subr.bf16.mxu0 0
        %1148 = vmatpush1.bf16.xpose.msra.mxu0 0
        %1149 = vmatprep.subr.bf16.mxu0 0
        %1150 = vmatpush1.bf16.xpose.msra.mxu0 0
        %1151 = vmatprep.mubr.bf16.mxu0 0
        %1152 = vmatmul.mubr.bf16.gmra.mrb[0].mxu0 %v1114
        %v1153 = vpop.f32.mrb[0].mxu0
        %v1154 = vadd.f32 0.0, %v1153
        %v1155 = vpop.f32.mrb[0].mxu0
        %v1156 = vpop.f32.mrb[0].mxu0
        %v1157 = vpop.f32.mrb[0].mxu0
        %1158 = vdwg.mxu0
        %1159 = vrot.lane.b32.xlu0 %v883, 120
        %v1160 = vpop.permute.xlu0 %1159
        %1161 = vrot.lane.b32.xlu0 %v883, 88
        %v1162 = vpop.permute.xlu0 %1161
        %v1164 = vsel %vm887, %v1160, 0
        %v1167 = vsel %vm887, %v1162, 0
        %1169 = vmatprep.subr.bf16.mxu0 0
        %1170 = vmatpush1.bf16.xpose.msra.mxu0 %v1167
        %1171 = vmatprep.subr.bf16.mxu0 0
        %1172 = vmatpush1.bf16.xpose.msra.mxu0 0
        %1173 = vmatprep.subr.bf16.mxu0 0
        %1174 = vmatpush1.bf16.xpose.msra.mxu0 0
        %1175 = vmatprep.subr.bf16.mxu0 0
        %1176 = vmatpush1.bf16.xpose.msra.mxu0 0
        %1177 = vmatprep.subr.bf16.mxu0 0
        %1178 = vmatpush1.bf16.xpose.msra.mxu0 0
        %1179 = vmatprep.subr.bf16.mxu0 0
        %1180 = vmatpush1.bf16.xpose.msra.mxu0 0
        %1181 = vmatprep.subr.bf16.mxu0 0
        %1182 = vmatpush1.bf16.xpose.msra.mxu0 0
        %1183 = vmatprep.subr.bf16.mxu0 0
        %1184 = vmatpush1.bf16.xpose.msra.mxu0 0
        %1185 = vmatprep.subr.bf16.mxu0 0
        %1186 = vmatpush1.bf16.xpose.msra.mxu0 0
        %1187 = vmatprep.subr.bf16.mxu0 0
        %1188 = vmatpush1.bf16.xpose.msra.mxu0 0
        %1189 = vmatprep.subr.bf16.mxu0 0
        %1190 = vmatpush1.bf16.xpose.msra.mxu0 0
        %1191 = vmatprep.subr.bf16.mxu0 0
        %1192 = vmatpush1.bf16.xpose.msra.mxu0 0
        %1193 = vmatprep.subr.bf16.mxu0 0
        %1194 = vmatpush1.bf16.xpose.msra.mxu0 0
        %1195 = vmatprep.subr.bf16.mxu0 0
        %1196 = vmatpush1.bf16.xpose.msra.mxu0 0
        %1197 = vmatprep.subr.bf16.mxu0 0
        %1198 = vmatpush1.bf16.xpose.msra.mxu0 0
        %1199 = vmatprep.subr.bf16.mxu0 0
        %1200 = vmatpush1.bf16.xpose.msra.mxu0 0
        %1201 = vmatprep.mubr.bf16.mxu0 0
        %1202 = vmatmul.mubr.bf16.gmra.mrb[0].mxu0 %v1164
        %v1203 = vpop.f32.mrb[0].mxu0
        %v1204 = vadd.f32 0.0, %v1203
        %v1205 = vpop.f32.mrb[0].mxu0
        %v1206 = vpop.f32.mrb[0].mxu0
        %v1207 = vpop.f32.mrb[0].mxu0
        %1208 = vdwg.mxu0
        %v1209 = vsel %vm984, -100000.0, %v1154
        %v1210 = vsel %vm984, -100000.0, %v1204
        %v1211 = vsel %vm887, %v1209, -inf
        %1212 = vmax.xlane.f32.xlu0 %v1211
        %v1213 = vpop.xlane.xlu0 %1212
        %v1214 = vsel %vm887, %v1210, -inf
        %1215 = vmax.xlane.f32.xlu0 %v1214
        %v1216 = vpop.xlane.xlu0 %1215
        %v1217 = vsub.f32 %v1209, %v1213
        %v1218 = vsub.f32 %v1210, %v1216
        %v1219 = vmul.f32 %v1217, 1.442695
        %v1220 = vpow.pop %v1219
        %v1221 = vmul.f32 %v1218, 1.442695
        %v1222 = vpow.pop %v1221
        %v1223 = vsel %vm887, %v1220, 0.0
        %1224 = vadd.xlane.f32.xlu0 %v1223
        %v1225 = vpop.xlane.xlu0 %1224
        %v1226 = vsel %vm887, %v1222, 0.0
        %1227 = vadd.xlane.f32.xlu0 %v1226
        %v1228 = vpop.xlane.xlu0 %1227
        %v1229 = vrcp.pop %v1225
        %v1230 = vmul.f32 %v1220, %v1229
        %v1231 = vrcp.pop %v1228
        %v1232 = vmul.f32 %v1222, %v1231
        %v1233 = vpack.c.bf16 %v1230, %v1230
        %v1234 = vpack.c.bf16 %v1232, %v1232
        %1235 = vrot.lane.b32.xlu0 %v882, 56
        %v1236 = vpop.permute.xlu0 %1235
        %v1238 = vsel %vm887, %v1233, 0
        %v1241 = vsel %vm1016, %v1236, 0
        %1243 = vmatprep.subr.bf16.mxu0 0
        %1244 = vmatpush1.bf16.msra.mxu0 %v1241
        %1245 = vmatprep.subr.bf16.mxu0 0
        %1246 = vmatpush1.bf16.msra.mxu0 0
        %1247 = vmatprep.subr.bf16.mxu0 0
        %1248 = vmatpush1.bf16.msra.mxu0 0
        %1249 = vmatprep.subr.bf16.mxu0 0
        %1250 = vmatpush1.bf16.msra.mxu0 0
        %1251 = vmatprep.subr.bf16.mxu0 0
        %1252 = vmatpush1.bf16.msra.mxu0 0
        %1253 = vmatprep.subr.bf16.mxu0 0
        %1254 = vmatpush1.bf16.msra.mxu0 0
        %1255 = vmatprep.subr.bf16.mxu0 0
        %1256 = vmatpush1.bf16.msra.mxu0 0
        %1257 = vmatprep.subr.bf16.mxu0 0
        %1258 = vmatpush1.bf16.msra.mxu0 0
        %1259 = vmatprep.subr.bf16.mxu0 0
        %1260 = vmatpush1.bf16.msra.mxu0 0
        %1261 = vmatprep.subr.bf16.mxu0 0
        %1262 = vmatpush1.bf16.msra.mxu0 0
        %1263 = vmatprep.subr.bf16.mxu0 0
        %1264 = vmatpush1.bf16.msra.mxu0 0
        %1265 = vmatprep.subr.bf16.mxu0 0
        %1266 = vmatpush1.bf16.msra.mxu0 0
        %1267 = vmatprep.subr.bf16.mxu0 0
        %1268 = vmatpush1.bf16.msra.mxu0 0
        %1269 = vmatprep.subr.bf16.mxu0 0
        %1270 = vmatpush1.bf16.msra.mxu0 0
        %1271 = vmatprep.subr.bf16.mxu0 0
        %1272 = vmatpush1.bf16.msra.mxu0 0
        %1273 = vmatprep.subr.bf16.mxu0 0
        %1274 = vmatpush1.bf16.msra.mxu0 0
        %1275 = vmatprep.mubr.bf16.mxu0 0
        %1276 = vmatmul.mubr.bf16.gmra.mrb[0].mxu0 %v1238
        %v1277 = vpop.f32.mrb[0].mxu0
        %v1278 = vadd.f32 0.0, %v1277
        %v1279 = vpop.f32.mrb[0].mxu0
        %v1280 = vpop.f32.mrb[0].mxu0
        %v1281 = vpop.f32.mrb[0].mxu0
        %1282 = vdwg.mxu0
        %1283 = vrot.lane.b32.xlu0 %v883, 56
        %v1284 = vpop.permute.xlu0 %1283
        %v1286 = vsel %vm887, %v1234, 0
        %v1289 = vsel %vm1016, %v1284, 0
        %1291 = vmatprep.subr.bf16.mxu0 0
        %1292 = vmatpush1.bf16.msra.mxu0 %v1289
        %1293 = vmatprep.subr.bf16.mxu0 0
        %1294 = vmatpush1.bf16.msra.mxu0 0
        %1295 = vmatprep.subr.bf16.mxu0 0
        %1296 = vmatpush1.bf16.msra.mxu0 0
        %1297 = vmatprep.subr.bf16.mxu0 0
        %1298 = vmatpush1.bf16.msra.mxu0 0
        %1299 = vmatprep.subr.bf16.mxu0 0
        %1300 = vmatpush1.bf16.msra.mxu0 0
        %1301 = vmatprep.subr.bf16.mxu0 0
        %1302 = vmatpush1.bf16.msra.mxu0 0
        %1303 = vmatprep.subr.bf16.mxu0 0
        %1304 = vmatpush1.bf16.msra.mxu0 0
        %1305 = vmatprep.subr.bf16.mxu0 0
        %1306 = vmatpush1.bf16.msra.mxu0 0
        %1307 = vmatprep.subr.bf16.mxu0 0
        %1308 = vmatpush1.bf16.msra.mxu0 0
        %1309 = vmatprep.subr.bf16.mxu0 0
        %1310 = vmatpush1.bf16.msra.mxu0 0
        %1311 = vmatprep.subr.bf16.mxu0 0
        %1312 = vmatpush1.bf16.msra.mxu0 0
        %1313 = vmatprep.subr.bf16.mxu0 0
        %1314 = vmatpush1.bf16.msra.mxu0 0
        %1315 = vmatprep.subr.bf16.mxu0 0
        %1316 = vmatpush1.bf16.msra.mxu0 0
        %1317 = vmatprep.subr.bf16.mxu0 0
        %1318 = vmatpush1.bf16.msra.mxu0 0
        %1319 = vmatprep.subr.bf16.mxu0 0
        %1320 = vmatpush1.bf16.msra.mxu0 0
        %1321 = vmatprep.subr.bf16.mxu0 0
        %1322 = vmatpush1.bf16.msra.mxu0 0
        %1323 = vmatprep.mubr.bf16.mxu0 0
        %1324 = vmatmul.mubr.bf16.gmra.mrb[0].mxu0 %v1286
        %v1325 = vpop.f32.mrb[0].mxu0
        %v1326 = vadd.f32 0.0, %v1325
        %v1327 = vpop.f32.mrb[0].mxu0
        %v1328 = vpop.f32.mrb[0].mxu0
        %v1329 = vpop.f32.mrb[0].mxu0
        %1330 = vdwg.mxu0
        %v1331 = vpack.c.bf16 %v1326, %v1278
        %v1333 = vsel %vm887, %v1331, 0
        %v1336 = vsel %vm1016, %v879, 0
        %1338 = vmatprep.subr.bf16.mxu0 0
        %1339 = vmatpush1.bf16.msra.mxu0 %v1336
        %1340 = vmatprep.subr.bf16.mxu0 0
        %1341 = vmatpush1.bf16.msra.mxu0 0
        %1342 = vmatprep.subr.bf16.mxu0 0
        %1343 = vmatpush1.bf16.msra.mxu0 0
        %1344 = vmatprep.subr.bf16.mxu0 0
        %1345 = vmatpush1.bf16.msra.mxu0 0
        %1346 = vmatprep.subr.bf16.mxu0 0
        %1347 = vmatpush1.bf16.msra.mxu0 0
        %1348 = vmatprep.subr.bf16.mxu0 0
        %1349 = vmatpush1.bf16.msra.mxu0 0
        %1350 = vmatprep.subr.bf16.mxu0 0
        %1351 = vmatpush1.bf16.msra.mxu0 0
        %1352 = vmatprep.subr.bf16.mxu0 0
        %1353 = vmatpush1.bf16.msra.mxu0 0
        %1354 = vmatprep.subr.bf16.mxu0 0
        %1355 = vmatpush1.bf16.msra.mxu0 0
        %1356 = vmatprep.subr.bf16.mxu0 0
        %1357 = vmatpush1.bf16.msra.mxu0 0
        %1358 = vmatprep.subr.bf16.mxu0 0
        %1359 = vmatpush1.bf16.msra.mxu0 0
        %1360 = vmatprep.subr.bf16.mxu0 0
        %1361 = vmatpush1.bf16.msra.mxu0 0
        %1362 = vmatprep.subr.bf16.mxu0 0
        %1363 = vmatpush1.bf16.msra.mxu0 0
        %1364 = vmatprep.subr.bf16.mxu0 0
        %1365 = vmatpush1.bf16.msra.mxu0 0
        %1366 = vmatprep.subr.bf16.mxu0 0
        %1367 = vmatpush1.bf16.msra.mxu0 0
        %1368 = vmatprep.subr.bf16.mxu0 0
        %1369 = vmatpush1.bf16.msra.mxu0 0
        %1370 = vmatprep.mubr.bf16.mxu0 0
        %1371 = vmatmul.mubr.bf16.gmra.mrb[0].mxu0 %v1333
        %v1372 = vpop.f32.mrb[0].mxu0
        %v1373 = vadd.f32 0.0, %v1372
        %v1374 = vpop.f32.mrb[0].mxu0
        %v1375 = vpop.f32.mrb[0].mxu0
        %v1376 = vadd.f32 0.0, %v1375
        %v1377 = vpop.f32.mrb[0].mxu0
        %1378 = vdwg.mxu0
        %v1380 = vsel %vm887, %v1108, 0
        %v1383 = vsel %vm1016, %v878, 0
        %1385 = vmatprep.subr.bf16.mxu0 0
        %1386 = vmatpush1.bf16.msra.mxu0 %v1383
        %1387 = vmatprep.subr.bf16.mxu0 0
        %1388 = vmatpush1.bf16.msra.mxu0 0
        %1389 = vmatprep.subr.bf16.mxu0 0
        %1390 = vmatpush1.bf16.msra.mxu0 0
        %1391 = vmatprep.subr.bf16.mxu0 0
        %1392 = vmatpush1.bf16.msra.mxu0 0
        %1393 = vmatprep.subr.bf16.mxu0 0
        %1394 = vmatpush1.bf16.msra.mxu0 0
        %1395 = vmatprep.subr.bf16.mxu0 0
        %1396 = vmatpush1.bf16.msra.mxu0 0
        %1397 = vmatprep.subr.bf16.mxu0 0
        %1398 = vmatpush1.bf16.msra.mxu0 0
        %1399 = vmatprep.subr.bf16.mxu0 0
        %1400 = vmatpush1.bf16.msra.mxu0 0
        %1401 = vmatprep.subr.bf16.mxu0 0
        %1402 = vmatpush1.bf16.msra.mxu0 0
        %1403 = vmatprep.subr.bf16.mxu0 0
        %1404 = vmatpush1.bf16.msra.mxu0 0
        %1405 = vmatprep.subr.bf16.mxu0 0
        %1406 = vmatpush1.bf16.msra.mxu0 0
        %1407 = vmatprep.subr.bf16.mxu0 0
        %1408 = vmatpush1.bf16.msra.mxu0 0
        %1409 = vmatprep.subr.bf16.mxu0 0
        %1410 = vmatpush1.bf16.msra.mxu0 0
        %1411 = vmatprep.subr.bf16.mxu0 0
        %1412 = vmatpush1.bf16.msra.mxu0 0
        %1413 = vmatprep.subr.bf16.mxu0 0
        %1414 = vmatpush1.bf16.msra.mxu0 0
        %1415 = vmatprep.subr.bf16.mxu0 0
        %1416 = vmatpush1.bf16.msra.mxu0 0
        %1417 = vmatprep.mubr.bf16.mxu0 0
        %1418 = vmatmul.mubr.bf16.gmra.mrb[0].mxu0 %v1380
        %v1419 = vpop.f32.mrb[0].mxu0
        %v1420 = vadd.f32 %v1373, %v1419
        %v1421 = vpop.f32.mrb[0].mxu0
        %v1422 = vpop.f32.mrb[0].mxu0
        %v1423 = vadd.f32 %v1376, %v1422
        %v1424 = vpop.f32.mrb[0].mxu0
        %1425 = vdwg.mxu0
        %1426 = vrot.lane.b32.xlu0 %v882, 112
        %v1427 = vpop.permute.xlu0 %1426
        %1428 = vrot.lane.b32.xlu0 %v882, 80
        %v1429 = vpop.permute.xlu0 %1428
        %v1431 = vsel %vm887, %v1427, 0
        %v1434 = vsel %vm887, %v1429, 0
        %1436 = vmatprep.subr.bf16.mxu0 0
        %1437 = vmatpush1.bf16.xpose.msra.mxu0 %v1434
        %1438 = vmatprep.subr.bf16.mxu0 0
        %1439 = vmatpush1.bf16.xpose.msra.mxu0 0
        %1440 = vmatprep.subr.bf16.mxu0 0
        %1441 = vmatpush1.bf16.xpose.msra.mxu0 0
        %1442 = vmatprep.subr.bf16.mxu0 0
        %1443 = vmatpush1.bf16.xpose.msra.mxu0 0
        %1444 = vmatprep.subr.bf16.mxu0 0
        %1445 = vmatpush1.bf16.xpose.msra.mxu0 0
        %1446 = vmatprep.subr.bf16.mxu0 0
        %1447 = vmatpush1.bf16.xpose.msra.mxu0 0
        %1448 = vmatprep.subr.bf16.mxu0 0
        %1449 = vmatpush1.bf16.xpose.msra.mxu0 0
        %1450 = vmatprep.subr.bf16.mxu0 0
        %1451 = vmatpush1.bf16.xpose.msra.mxu0 0
        %1452 = vmatprep.subr.bf16.mxu0 0
        %1453 = vmatpush1.bf16.xpose.msra.mxu0 0
        %1454 = vmatprep.subr.bf16.mxu0 0
        %1455 = vmatpush1.bf16.xpose.msra.mxu0 0
        %1456 = vmatprep.subr.bf16.mxu0 0
        %1457 = vmatpush1.bf16.xpose.msra.mxu0 0
        %1458 = vmatprep.subr.bf16.mxu0 0
        %1459 = vmatpush1.bf16.xpose.msra.mxu0 0
        %1460 = vmatprep.subr.bf16.mxu0 0
        %1461 = vmatpush1.bf16.xpose.msra.mxu0 0
        %1462 = vmatprep.subr.bf16.mxu0 0
        %1463 = vmatpush1.bf16.xpose.msra.mxu0 0
        %1464 = vmatprep.subr.bf16.mxu0 0
        %1465 = vmatpush1.bf16.xpose.msra.mxu0 0
        %1466 = vmatprep.subr.bf16.mxu0 0
        %1467 = vmatpush1.bf16.xpose.msra.mxu0 0
        %1468 = vmatprep.mubr.bf16.mxu0 0
        %1469 = vmatmul.mubr.bf16.gmra.mrb[0].mxu0 %v1431
        %v1470 = vpop.f32.mrb[0].mxu0
        %v1471 = vadd.f32 0.0, %v1470
        %v1472 = vpop.f32.mrb[0].mxu0
        %v1473 = vpop.f32.mrb[0].mxu0
        %v1474 = vpop.f32.mrb[0].mxu0
        %1475 = vdwg.mxu0
        %1476 = vrot.lane.b32.xlu0 %v883, 112
        %v1477 = vpop.permute.xlu0 %1476
        %1478 = vrot.lane.b32.xlu0 %v883, 80
        %v1479 = vpop.permute.xlu0 %1478
        %v1481 = vsel %vm887, %v1477, 0
        %v1484 = vsel %vm887, %v1479, 0
        %1486 = vmatprep.subr.bf16.mxu0 0
        %1487 = vmatpush1.bf16.xpose.msra.mxu0 %v1484
        %1488 = vmatprep.subr.bf16.mxu0 0
        %1489 = vmatpush1.bf16.xpose.msra.mxu0 0
        %1490 = vmatprep.subr.bf16.mxu0 0
        %1491 = vmatpush1.bf16.xpose.msra.mxu0 0
        %1492 = vmatprep.subr.bf16.mxu0 0
        %1493 = vmatpush1.bf16.xpose.msra.mxu0 0
        %1494 = vmatprep.subr.bf16.mxu0 0
        %1495 = vmatpush1.bf16.xpose.msra.mxu0 0
        %1496 = vmatprep.subr.bf16.mxu0 0
        %1497 = vmatpush1.bf16.xpose.msra.mxu0 0
        %1498 = vmatprep.subr.bf16.mxu0 0
        %1499 = vmatpush1.bf16.xpose.msra.mxu0 0
        %1500 = vmatprep.subr.bf16.mxu0 0
        %1501 = vmatpush1.bf16.xpose.msra.mxu0 0
        %1502 = vmatprep.subr.bf16.mxu0 0
        %1503 = vmatpush1.bf16.xpose.msra.mxu0 0
        %1504 = vmatprep.subr.bf16.mxu0 0
        %1505 = vmatpush1.bf16.xpose.msra.mxu0 0
        %1506 = vmatprep.subr.bf16.mxu0 0
        %1507 = vmatpush1.bf16.xpose.msra.mxu0 0
        %1508 = vmatprep.subr.bf16.mxu0 0
        %1509 = vmatpush1.bf16.xpose.msra.mxu0 0
        %1510 = vmatprep.subr.bf16.mxu0 0
        %1511 = vmatpush1.bf16.xpose.msra.mxu0 0
        %1512 = vmatprep.subr.bf16.mxu0 0
        %1513 = vmatpush1.bf16.xpose.msra.mxu0 0
        %1514 = vmatprep.subr.bf16.mxu0 0
        %1515 = vmatpush1.bf16.xpose.msra.mxu0 0
        %1516 = vmatprep.subr.bf16.mxu0 0
        %1517 = vmatpush1.bf16.xpose.msra.mxu0 0
        %1518 = vmatprep.mubr.bf16.mxu0 0
        %1519 = vmatmul.mubr.bf16.gmra.mrb[0].mxu0 %v1481
        %v1520 = vpop.f32.mrb[0].mxu0
        %v1521 = vadd.f32 0.0, %v1520
        %v1522 = vpop.f32.mrb[0].mxu0
        %v1523 = vpop.f32.mrb[0].mxu0
        %v1524 = vpop.f32.mrb[0].mxu0
        %1525 = vdwg.mxu0
        %v1526 = vsel %vm984, -100000.0, %v1471
        %v1527 = vsel %vm984, -100000.0, %v1521
        %v1528 = vsel %vm887, %v1526, -inf
        %1529 = vmax.xlane.f32.xlu0 %v1528
        %v1530 = vpop.xlane.xlu0 %1529
        %v1531 = vsel %vm887, %v1527, -inf
        %1532 = vmax.xlane.f32.xlu0 %v1531
        %v1533 = vpop.xlane.xlu0 %1532
        %v1534 = vsub.f32 %v1526, %v1530
        %v1535 = vsub.f32 %v1527, %v1533
        %v1536 = vmul.f32 %v1534, 1.442695
        %v1537 = vpow.pop %v1536
        %v1538 = vmul.f32 %v1535, 1.442695
        %v1539 = vpow.pop %v1538
        %v1540 = vsel %vm887, %v1537, 0.0
        %1541 = vadd.xlane.f32.xlu0 %v1540
        %v1542 = vpop.xlane.xlu0 %1541
        %v1543 = vsel %vm887, %v1539, 0.0
        %1544 = vadd.xlane.f32.xlu0 %v1543
        %v1545 = vpop.xlane.xlu0 %1544
        %v1546 = vrcp.pop %v1542
        %v1547 = vmul.f32 %v1537, %v1546
        %v1548 = vrcp.pop %v1545
        %v1549 = vmul.f32 %v1539, %v1548
        %v1550 = vpack.c.bf16 %v1547, %v1547
        %v1551 = vpack.c.bf16 %v1549, %v1549
        %1552 = vrot.lane.b32.xlu0 %v882, 48
        %v1553 = vpop.permute.xlu0 %1552
        %v1555 = vsel %vm887, %v1550, 0
        %v1558 = vsel %vm1016, %v1553, 0
        %1560 = vmatprep.subr.bf16.mxu0 0
        %1561 = vmatpush1.bf16.msra.mxu0 %v1558
        %1562 = vmatprep.subr.bf16.mxu0 0
        %1563 = vmatpush1.bf16.msra.mxu0 0
        %1564 = vmatprep.subr.bf16.mxu0 0
        %1565 = vmatpush1.bf16.msra.mxu0 0
        %1566 = vmatprep.subr.bf16.mxu0 0
        %1567 = vmatpush1.bf16.msra.mxu0 0
        %1568 = vmatprep.subr.bf16.mxu0 0
        %1569 = vmatpush1.bf16.msra.mxu0 0
        %1570 = vmatprep.subr.bf16.mxu0 0
        %1571 = vmatpush1.bf16.msra.mxu0 0
        %1572 = vmatprep.subr.bf16.mxu0 0
        %1573 = vmatpush1.bf16.msra.mxu0 0
        %1574 = vmatprep.subr.bf16.mxu0 0
        %1575 = vmatpush1.bf16.msra.mxu0 0
        %1576 = vmatprep.subr.bf16.mxu0 0
        %1577 = vmatpush1.bf16.msra.mxu0 0
        %1578 = vmatprep.subr.bf16.mxu0 0
        %1579 = vmatpush1.bf16.msra.mxu0 0
        %1580 = vmatprep.subr.bf16.mxu0 0
        %1581 = vmatpush1.bf16.msra.mxu0 0
        %1582 = vmatprep.subr.bf16.mxu0 0
        %1583 = vmatpush1.bf16.msra.mxu0 0
        %1584 = vmatprep.subr.bf16.mxu0 0
        %1585 = vmatpush1.bf16.msra.mxu0 0
        %1586 = vmatprep.subr.bf16.mxu0 0
        %1587 = vmatpush1.bf16.msra.mxu0 0
        %1588 = vmatprep.subr.bf16.mxu0 0
        %1589 = vmatpush1.bf16.msra.mxu0 0
        %1590 = vmatprep.subr.bf16.mxu0 0
        %1591 = vmatpush1.bf16.msra.mxu0 0
        %1592 = vmatprep.mubr.bf16.mxu0 0
        %1593 = vmatmul.mubr.bf16.gmra.mrb[0].mxu0 %v1555
        %v1594 = vpop.f32.mrb[0].mxu0
        %v1595 = vadd.f32 0.0, %v1594
        %v1596 = vpop.f32.mrb[0].mxu0
        %v1597 = vpop.f32.mrb[0].mxu0
        %v1598 = vpop.f32.mrb[0].mxu0
        %1599 = vdwg.mxu0
        %1600 = vrot.lane.b32.xlu0 %v883, 48
        %v1601 = vpop.permute.xlu0 %1600
        %v1603 = vsel %vm887, %v1551, 0
        %v1606 = vsel %vm1016, %v1601, 0
        %1608 = vmatprep.subr.bf16.mxu0 0
        %1609 = vmatpush1.bf16.msra.mxu0 %v1606
        %1610 = vmatprep.subr.bf16.mxu0 0
        %1611 = vmatpush1.bf16.msra.mxu0 0
        %1612 = vmatprep.subr.bf16.mxu0 0
        %1613 = vmatpush1.bf16.msra.mxu0 0
        %1614 = vmatprep.subr.bf16.mxu0 0
        %1615 = vmatpush1.bf16.msra.mxu0 0
        %1616 = vmatprep.subr.bf16.mxu0 0
        %1617 = vmatpush1.bf16.msra.mxu0 0
        %1618 = vmatprep.subr.bf16.mxu0 0
        %1619 = vmatpush1.bf16.msra.mxu0 0
        %1620 = vmatprep.subr.bf16.mxu0 0
        %1621 = vmatpush1.bf16.msra.mxu0 0
        %1622 = vmatprep.subr.bf16.mxu0 0
        %1623 = vmatpush1.bf16.msra.mxu0 0
        %1624 = vmatprep.subr.bf16.mxu0 0
        %1625 = vmatpush1.bf16.msra.mxu0 0
        %1626 = vmatprep.subr.bf16.mxu0 0
        %1627 = vmatpush1.bf16.msra.mxu0 0
        %1628 = vmatprep.subr.bf16.mxu0 0
        %1629 = vmatpush1.bf16.msra.mxu0 0
        %1630 = vmatprep.subr.bf16.mxu0 0
        %1631 = vmatpush1.bf16.msra.mxu0 0
        %1632 = vmatprep.subr.bf16.mxu0 0
        %1633 = vmatpush1.bf16.msra.mxu0 0
        %1634 = vmatprep.subr.bf16.mxu0 0
        %1635 = vmatpush1.bf16.msra.mxu0 0
        %1636 = vmatprep.subr.bf16.mxu0 0
        %1637 = vmatpush1.bf16.msra.mxu0 0
        %1638 = vmatprep.subr.bf16.mxu0 0
        %1639 = vmatpush1.bf16.msra.mxu0 0
        %1640 = vmatprep.mubr.bf16.mxu0 0
        %1641 = vmatmul.mubr.bf16.gmra.mrb[0].mxu0 %v1603
        %v1642 = vpop.f32.mrb[0].mxu0
        %v1643 = vadd.f32 0.0, %v1642
        %v1644 = vpop.f32.mrb[0].mxu0
        %v1645 = vpop.f32.mrb[0].mxu0
        %v1646 = vpop.f32.mrb[0].mxu0
        %1647 = vdwg.mxu0
        %v1648 = vpack.c.bf16 %v1643, %v1595
        %v1650 = vsel %vm887, %v1648, 0
        %v1653 = vsel %vm1016, %v880, 0
        %1655 = vmatprep.subr.bf16.mxu0 0
        %1656 = vmatpush1.bf16.msra.mxu0 %v1653
        %1657 = vmatprep.subr.bf16.mxu0 0
        %1658 = vmatpush1.bf16.msra.mxu0 0
        %1659 = vmatprep.subr.bf16.mxu0 0
        %1660 = vmatpush1.bf16.msra.mxu0 0
        %1661 = vmatprep.subr.bf16.mxu0 0
        %1662 = vmatpush1.bf16.msra.mxu0 0
        %1663 = vmatprep.subr.bf16.mxu0 0
        %1664 = vmatpush1.bf16.msra.mxu0 0
        %1665 = vmatprep.subr.bf16.mxu0 0
        %1666 = vmatpush1.bf16.msra.mxu0 0
        %1667 = vmatprep.subr.bf16.mxu0 0
        %1668 = vmatpush1.bf16.msra.mxu0 0
        %1669 = vmatprep.subr.bf16.mxu0 0
        %1670 = vmatpush1.bf16.msra.mxu0 0
        %1671 = vmatprep.subr.bf16.mxu0 0
        %1672 = vmatpush1.bf16.msra.mxu0 0
        %1673 = vmatprep.subr.bf16.mxu0 0
        %1674 = vmatpush1.bf16.msra.mxu0 0
        %1675 = vmatprep.subr.bf16.mxu0 0
        %1676 = vmatpush1.bf16.msra.mxu0 0
        %1677 = vmatprep.subr.bf16.mxu0 0
        %1678 = vmatpush1.bf16.msra.mxu0 0
        %1679 = vmatprep.subr.bf16.mxu0 0
        %1680 = vmatpush1.bf16.msra.mxu0 0
        %1681 = vmatprep.subr.bf16.mxu0 0
        %1682 = vmatpush1.bf16.msra.mxu0 0
        %1683 = vmatprep.subr.bf16.mxu0 0
        %1684 = vmatpush1.bf16.msra.mxu0 0
        %1685 = vmatprep.subr.bf16.mxu0 0
        %1686 = vmatpush1.bf16.msra.mxu0 0
        %1687 = vmatprep.mubr.bf16.mxu0 0
        %1688 = vmatmul.mubr.bf16.gmra.mrb[0].mxu0 %v1650
        %v1689 = vpop.f32.mrb[0].mxu0
        %v1690 = vadd.f32 0.0, %v1689
        %v1691 = vpop.f32.mrb[0].mxu0
        %v1692 = vpop.f32.mrb[0].mxu0
        %v1693 = vadd.f32 0.0, %v1692
        %v1694 = vpop.f32.mrb[0].mxu0
        %1695 = vdwg.mxu0
        %v1696 = vadd.f32 %v1420, %v1690
        %v1697 = vadd.f32 %v1423, %v1693
        %1698 = vrot.lane.b32.xlu0 %v882, 104
        %v1699 = vpop.permute.xlu0 %1698
        %1700 = vrot.lane.b32.xlu0 %v882, 72
        %v1701 = vpop.permute.xlu0 %1700
        %v1703 = vsel %vm887, %v1699, 0
        %v1706 = vsel %vm887, %v1701, 0
        %1708 = vmatprep.subr.bf16.mxu0 0
        %1709 = vmatpush1.bf16.xpose.msra.mxu0 %v1706
        %1710 = vmatprep.subr.bf16.mxu0 0
        %1711 = vmatpush1.bf16.xpose.msra.mxu0 0
        %1712 = vmatprep.subr.bf16.mxu0 0
        %1713 = vmatpush1.bf16.xpose.msra.mxu0 0
        %1714 = vmatprep.subr.bf16.mxu0 0
        %1715 = vmatpush1.bf16.xpose.msra.mxu0 0
        %1716 = vmatprep.subr.bf16.mxu0 0
        %1717 = vmatpush1.bf16.xpose.msra.mxu0 0
        %1718 = vmatprep.subr.bf16.mxu0 0
        %1719 = vmatpush1.bf16.xpose.msra.mxu0 0
        %1720 = vmatprep.subr.bf16.mxu0 0
        %1721 = vmatpush1.bf16.xpose.msra.mxu0 0
        %1722 = vmatprep.subr.bf16.mxu0 0
        %1723 = vmatpush1.bf16.xpose.msra.mxu0 0
        %1724 = vmatprep.subr.bf16.mxu0 0
        %1725 = vmatpush1.bf16.xpose.msra.mxu0 0
        %1726 = vmatprep.subr.bf16.mxu0 0
        %1727 = vmatpush1.bf16.xpose.msra.mxu0 0
        %1728 = vmatprep.subr.bf16.mxu0 0
        %1729 = vmatpush1.bf16.xpose.msra.mxu0 0
        %1730 = vmatprep.subr.bf16.mxu0 0
        %1731 = vmatpush1.bf16.xpose.msra.mxu0 0
        %1732 = vmatprep.subr.bf16.mxu0 0
        %1733 = vmatpush1.bf16.xpose.msra.mxu0 0
        %1734 = vmatprep.subr.bf16.mxu0 0
        %1735 = vmatpush1.bf16.xpose.msra.mxu0 0
        %1736 = vmatprep.subr.bf16.mxu0 0
        %1737 = vmatpush1.bf16.xpose.msra.mxu0 0
        %1738 = vmatprep.subr.bf16.mxu0 0
        %1739 = vmatpush1.bf16.xpose.msra.mxu0 0
        %1740 = vmatprep.mubr.bf16.mxu0 0
        %1741 = vmatmul.mubr.bf16.gmra.mrb[0].mxu0 %v1703
        %v1742 = vpop.f32.mrb[0].mxu0
        %v1743 = vadd.f32 0.0, %v1742
        %v1744 = vpop.f32.mrb[0].mxu0
        %v1745 = vpop.f32.mrb[0].mxu0
        %v1746 = vpop.f32.mrb[0].mxu0
        %1747 = vdwg.mxu0
        %1748 = vrot.lane.b32.xlu0 %v883, 104
        %v1749 = vpop.permute.xlu0 %1748
        %1750 = vrot.lane.b32.xlu0 %v883, 72
        %v1751 = vpop.permute.xlu0 %1750
        %v1753 = vsel %vm887, %v1749, 0
        %v1756 = vsel %vm887, %v1751, 0
        %1758 = vmatprep.subr.bf16.mxu0 0
        %1759 = vmatpush1.bf16.xpose.msra.mxu0 %v1756
        %1760 = vmatprep.subr.bf16.mxu0 0
        %1761 = vmatpush1.bf16.xpose.msra.mxu0 0
        %1762 = vmatprep.subr.bf16.mxu0 0
        %1763 = vmatpush1.bf16.xpose.msra.mxu0 0
        %1764 = vmatprep.subr.bf16.mxu0 0
        %1765 = vmatpush1.bf16.xpose.msra.mxu0 0
        %1766 = vmatprep.subr.bf16.mxu0 0
        %1767 = vmatpush1.bf16.xpose.msra.mxu0 0
        %1768 = vmatprep.subr.bf16.mxu0 0
        %1769 = vmatpush1.bf16.xpose.msra.mxu0 0
        %1770 = vmatprep.subr.bf16.mxu0 0
        %1771 = vmatpush1.bf16.xpose.msra.mxu0 0
        %1772 = vmatprep.subr.bf16.mxu0 0
        %1773 = vmatpush1.bf16.xpose.msra.mxu0 0
        %1774 = vmatprep.subr.bf16.mxu0 0
        %1775 = vmatpush1.bf16.xpose.msra.mxu0 0
        %1776 = vmatprep.subr.bf16.mxu0 0
        %1777 = vmatpush1.bf16.xpose.msra.mxu0 0
        %1778 = vmatprep.subr.bf16.mxu0 0
        %1779 = vmatpush1.bf16.xpose.msra.mxu0 0
        %1780 = vmatprep.subr.bf16.mxu0 0
        %1781 = vmatpush1.bf16.xpose.msra.mxu0 0
        %1782 = vmatprep.subr.bf16.mxu0 0
        %1783 = vmatpush1.bf16.xpose.msra.mxu0 0
        %1784 = vmatprep.subr.bf16.mxu0 0
        %1785 = vmatpush1.bf16.xpose.msra.mxu0 0
        %1786 = vmatprep.subr.bf16.mxu0 0
        %1787 = vmatpush1.bf16.xpose.msra.mxu0 0
        %1788 = vmatprep.subr.bf16.mxu0 0
        %1789 = vmatpush1.bf16.xpose.msra.mxu0 0
        %1790 = vmatprep.mubr.bf16.mxu0 0
        %1791 = vmatmul.mubr.bf16.gmra.mrb[0].mxu0 %v1753
        %v1792 = vpop.f32.mrb[0].mxu0
        %v1793 = vadd.f32 0.0, %v1792
        %v1794 = vpop.f32.mrb[0].mxu0
        %v1795 = vpop.f32.mrb[0].mxu0
        %v1796 = vpop.f32.mrb[0].mxu0
        %1797 = vdwg.mxu0
        %v1798 = vsel %vm984, -100000.0, %v1743
        %v1799 = vsel %vm984, -100000.0, %v1793
        %v1800 = vsel %vm887, %v1798, -inf
        %1801 = vmax.xlane.f32.xlu0 %v1800
        %v1802 = vpop.xlane.xlu0 %1801
        %v1803 = vsel %vm887, %v1799, -inf
        %1804 = vmax.xlane.f32.xlu0 %v1803
        %v1805 = vpop.xlane.xlu0 %1804
        %v1806 = vsub.f32 %v1798, %v1802
        %v1807 = vsub.f32 %v1799, %v1805
        %v1808 = vmul.f32 %v1806, 1.442695
        %v1809 = vpow.pop %v1808
        %v1810 = vmul.f32 %v1807, 1.442695
        %v1811 = vpow.pop %v1810
        %v1812 = vsel %vm887, %v1809, 0.0
        %1813 = vadd.xlane.f32.xlu0 %v1812
        %v1814 = vpop.xlane.xlu0 %1813
        %v1815 = vsel %vm887, %v1811, 0.0
        %1816 = vadd.xlane.f32.xlu0 %v1815
        %v1817 = vpop.xlane.xlu0 %1816
        %v1818 = vrcp.pop %v1814
        %v1819 = vmul.f32 %v1809, %v1818
        %v1820 = vrcp.pop %v1817
        %v1821 = vmul.f32 %v1811, %v1820
        %v1822 = vpack.c.bf16 %v1819, %v1819
        %v1823 = vpack.c.bf16 %v1821, %v1821
        %1824 = vrot.lane.b32.xlu0 %v882, 40
        %v1825 = vpop.permute.xlu0 %1824
        %v1827 = vsel %vm887, %v1822, 0
        %v1830 = vsel %vm1016, %v1825, 0
        %1832 = vmatprep.subr.bf16.mxu0 0
        %1833 = vmatpush1.bf16.msra.mxu0 %v1830
        %1834 = vmatprep.subr.bf16.mxu0 0
        %1835 = vmatpush1.bf16.msra.mxu0 0
        %1836 = vmatprep.subr.bf16.mxu0 0
        %1837 = vmatpush1.bf16.msra.mxu0 0
        %1838 = vmatprep.subr.bf16.mxu0 0
        %1839 = vmatpush1.bf16.msra.mxu0 0
        %1840 = vmatprep.subr.bf16.mxu0 0
        %1841 = vmatpush1.bf16.msra.mxu0 0
        %1842 = vmatprep.subr.bf16.mxu0 0
        %1843 = vmatpush1.bf16.msra.mxu0 0
        %1844 = vmatprep.subr.bf16.mxu0 0
        %1845 = vmatpush1.bf16.msra.mxu0 0
        %1846 = vmatprep.subr.bf16.mxu0 0
        %1847 = vmatpush1.bf16.msra.mxu0 0
        %1848 = vmatprep.subr.bf16.mxu0 0
        %1849 = vmatpush1.bf16.msra.mxu0 0
        %1850 = vmatprep.subr.bf16.mxu0 0
        %1851 = vmatpush1.bf16.msra.mxu0 0
        %1852 = vmatprep.subr.bf16.mxu0 0
        %1853 = vmatpush1.bf16.msra.mxu0 0
        %1854 = vmatprep.subr.bf16.mxu0 0
        %1855 = vmatpush1.bf16.msra.mxu0 0
        %1856 = vmatprep.subr.bf16.mxu0 0
        %1857 = vmatpush1.bf16.msra.mxu0 0
        %1858 = vmatprep.subr.bf16.mxu0 0
        %1859 = vmatpush1.bf16.msra.mxu0 0
        %1860 = vmatprep.subr.bf16.mxu0 0
        %1861 = vmatpush1.bf16.msra.mxu0 0
        %1862 = vmatprep.subr.bf16.mxu0 0
        %1863 = vmatpush1.bf16.msra.mxu0 0
        %1864 = vmatprep.mubr.bf16.mxu0 0
        %1865 = vmatmul.mubr.bf16.gmra.mrb[0].mxu0 %v1827
        %v1866 = vpop.f32.mrb[0].mxu0
        %v1867 = vadd.f32 0.0, %v1866
        %v1868 = vpop.f32.mrb[0].mxu0
        %v1869 = vpop.f32.mrb[0].mxu0
        %v1870 = vpop.f32.mrb[0].mxu0
        %1871 = vdwg.mxu0
        %1872 = vrot.lane.b32.xlu0 %v883, 40
        %v1873 = vpop.permute.xlu0 %1872
        %v1875 = vsel %vm887, %v1823, 0
        %v1878 = vsel %vm1016, %v1873, 0
        %1880 = vmatprep.subr.bf16.mxu0 0
        %1881 = vmatpush1.bf16.msra.mxu0 %v1878
        %1882 = vmatprep.subr.bf16.mxu0 0
        %1883 = vmatpush1.bf16.msra.mxu0 0
        %1884 = vmatprep.subr.bf16.mxu0 0
        %1885 = vmatpush1.bf16.msra.mxu0 0
        %1886 = vmatprep.subr.bf16.mxu0 0
        %1887 = vmatpush1.bf16.msra.mxu0 0
        %1888 = vmatprep.subr.bf16.mxu0 0
        %1889 = vmatpush1.bf16.msra.mxu0 0
        %1890 = vmatprep.subr.bf16.mxu0 0
        %1891 = vmatpush1.bf16.msra.mxu0 0
        %1892 = vmatprep.subr.bf16.mxu0 0
        %1893 = vmatpush1.bf16.msra.mxu0 0
        %1894 = vmatprep.subr.bf16.mxu0 0
        %1895 = vmatpush1.bf16.msra.mxu0 0
        %1896 = vmatprep.subr.bf16.mxu0 0
        %1897 = vmatpush1.bf16.msra.mxu0 0
        %1898 = vmatprep.subr.bf16.mxu0 0
        %1899 = vmatpush1.bf16.msra.mxu0 0
        %1900 = vmatprep.subr.bf16.mxu0 0
        %1901 = vmatpush1.bf16.msra.mxu0 0
        %1902 = vmatprep.subr.bf16.mxu0 0
        %1903 = vmatpush1.bf16.msra.mxu0 0
        %1904 = vmatprep.subr.bf16.mxu0 0
        %1905 = vmatpush1.bf16.msra.mxu0 0
        %1906 = vmatprep.subr.bf16.mxu0 0
        %1907 = vmatpush1.bf16.msra.mxu0 0
        %1908 = vmatprep.subr.bf16.mxu0 0
        %1909 = vmatpush1.bf16.msra.mxu0 0
        %1910 = vmatprep.subr.bf16.mxu0 0
        %1911 = vmatpush1.bf16.msra.mxu0 0
        %1912 = vmatprep.mubr.bf16.mxu0 0
        %1913 = vmatmul.mubr.bf16.gmra.mrb[0].mxu0 %v1875
        %v1914 = vpop.f32.mrb[0].mxu0
        %v1915 = vadd.f32 0.0, %v1914
        %v1916 = vpop.f32.mrb[0].mxu0
        %v1917 = vpop.f32.mrb[0].mxu0
        %v1918 = vpop.f32.mrb[0].mxu0
        %1919 = vdwg.mxu0
        %v1920 = vpack.c.bf16 %v1915, %v1867
        %v1922 = vsel %vm887, %v1920, 0
        %v1925 = vsel %vm1016, %v881, 0
        %1927 = vmatprep.subr.bf16.mxu0 0
        %1928 = vmatpush1.bf16.msra.mxu0 %v1925
        %1929 = vmatprep.subr.bf16.mxu0 0
        %1930 = vmatpush1.bf16.msra.mxu0 0
        %1931 = vmatprep.subr.bf16.mxu0 0
        %1932 = vmatpush1.bf16.msra.mxu0 0
        %1933 = vmatprep.subr.bf16.mxu0 0
        %1934 = vmatpush1.bf16.msra.mxu0 0
        %1935 = vmatprep.subr.bf16.mxu0 0
        %1936 = vmatpush1.bf16.msra.mxu0 0
        %1937 = vmatprep.subr.bf16.mxu0 0
        %1938 = vmatpush1.bf16.msra.mxu0 0
        %1939 = vmatprep.subr.bf16.mxu0 0
        %1940 = vmatpush1.bf16.msra.mxu0 0
        %1941 = vmatprep.subr.bf16.mxu0 0
        %1942 = vmatpush1.bf16.msra.mxu0 0
        %1943 = vmatprep.subr.bf16.mxu0 0
        %1944 = vmatpush1.bf16.msra.mxu0 0
        %1945 = vmatprep.subr.bf16.mxu0 0
        %1946 = vmatpush1.bf16.msra.mxu0 0
        %1947 = vmatprep.subr.bf16.mxu0 0
        %1948 = vmatpush1.bf16.msra.mxu0 0
        %1949 = vmatprep.subr.bf16.mxu0 0
        %1950 = vmatpush1.bf16.msra.mxu0 0
        %1951 = vmatprep.subr.bf16.mxu0 0
        %1952 = vmatpush1.bf16.msra.mxu0 0
        %1953 = vmatprep.subr.bf16.mxu0 0
        %1954 = vmatpush1.bf16.msra.mxu0 0
        %1955 = vmatprep.subr.bf16.mxu0 0
        %1956 = vmatpush1.bf16.msra.mxu0 0
        %1957 = vmatprep.subr.bf16.mxu0 0
        %1958 = vmatpush1.bf16.msra.mxu0 0
        %1959 = vmatprep.mubr.bf16.mxu0 0
        %1960 = vmatmul.mubr.bf16.gmra.mrb[0].mxu0 %v1922
        %v1961 = vpop.f32.mrb[0].mxu0
        %v1962 = vadd.f32 0.0, %v1961
        %v1963 = vpop.f32.mrb[0].mxu0
        %v1964 = vpop.f32.mrb[0].mxu0
        %v1965 = vadd.f32 0.0, %v1964
        %v1966 = vpop.f32.mrb[0].mxu0
        %1967 = vdwg.mxu0
        %v1968 = vadd.f32 %v1696, %v1962
        %v1969 = vadd.f32 %v1697, %v1965
        %v1970 = vld [vmem:[%s723] sm:$0x1]
        %v1972 = vlaneseq
        %v1973 = vshrl.u32 %v1972, 7
        %v1974 = vsub.s32 0, %v1973
        %v1975 = vrot.slane %v1970, %v1974
        %v1977 = vadd.f32 %v1968, %v1975
        %v1978 = vadd.f32 %v1969, %v1975
        %v1979 = vadd.f32 %v757, %v1977
        %v1980 = vadd.f32 %v758, %v1978
        %v1981 = vld [vmem:[%s726] sm:$0x1]
        %v1982 = vld [vmem:[%s729] sm:$0x1]
        %v1983 = vsel %vm761, %v1979, 0.0
        %1984 = vadd.xlane.f32.xlu0 %v1983
        %v1985 = vpop.xlane.xlu0 %1984
        %v1986 = vsel %vm761, %v1980, 0.0
        %1987 = vadd.xlane.f32.xlu0 %v1986
        %v1988 = vpop.xlane.xlu0 %1987
        %v1989 = vmul.f32 %v1985, %v768
        %v1990 = vmul.f32 %v1988, %v768
        %v1991 = vsub.f32 %v1979, %v1989
        %v1992 = vsub.f32 %v1980, %v1990
        %v1993 = vmul.f32 %v1991, %v1991
        %v1994 = vmul.f32 %v1992, %v1992
        %v1995 = vsel %vm761, %v1993, 0.0
        %1996 = vadd.xlane.f32.xlu0 %v1995
        %v1997 = vpop.xlane.xlu0 %1996
        %v1998 = vsel %vm761, %v1994, 0.0
        %1999 = vadd.xlane.f32.xlu0 %v1998
        %v2000 = vpop.xlane.xlu0 %1999
        %v2001 = vmul.f32 %v1997, %v768
        %v2002 = vmul.f32 %v2000, %v768
        %v2003 = vadd.f32 %v2001, 1e-05
        %v2004 = vadd.f32 %v2002, 1e-05
        %v2005 = vrsqrt.pop %v2003
        %v2006 = vrsqrt.pop %v2004
        %v2007 = vmul.f32 %v1991, %v2005
        %v2008 = vmul.f32 %v1992, %v2006
        %v2010 = vlaneseq
        %v2011 = vshrl.u32 %v2010, 7
        %v2012 = vsub.s32 0, %v2011
        %v2013 = vrot.slane %v1981, %v2012
        %v2015 = vmul.f32 %v2007, %v2013
        %v2016 = vmul.f32 %v2008, %v2013
        %v2018 = vlaneseq
        %v2019 = vshrl.u32 %v2018, 7
        %v2020 = vsub.s32 0, %v2019
        %v2021 = vrot.slane %v1982, %v2020
        %v2023 = vadd.f32 %v2015, %v2021
        %v2024 = vadd.f32 %v2016, %v2021
        %v2025 = vpack.c.bf16 %v2024, %v2023
        %v2026 = vld [vmem:[%s734] sm:$0xf]
        %v2027 = vld [vmem:[%s734 + $0x4] sm:$0xf]
        %v2028 = vld [vmem:[%s734 + $0x8] sm:$0xf]
        %v2029 = vld [vmem:[%s734 + $0xc] sm:$0xf]
        %v2030 = vld [vmem:[%s737] sm:$0x1]
        %v2032 = vlaneseq
        %v2033 = vshrl.u32 %v2032, 7
        %v2034 = vsub.s32 0, %v2033
        %v2035 = vrot.slane %v2030, %v2034
        %v2041 = vunpack.c.l.b16 %v2026
        %v2042 = vunpack.c.l.b16 %v2027
        %v2043 = vunpack.c.l.b16 %v2028
        %v2044 = vunpack.c.l.b16 %v2029
        %v2045 = vpack.c.b16 %v2042, %v2041
        %v2046 = vpack.c.b16 %v2044, %v2043
        %v2050 = vsel %vm761, %v2025, 0
        %2052 = vmatprep.subr.bf16.mxu0 0
        %2053 = vmatpush1.bf16.msra.mxu0 %v2045
        %2054 = vmatprep.subr.bf16.mxu0 0
        %2055 = vmatpush1.bf16.msra.mxu0 %v2046
        %2056 = vmatprep.subr.bf16.mxu0 0
        %2057 = vmatpush1.bf16.msra.mxu0 0
        %2058 = vmatprep.subr.bf16.mxu0 0
        %2059 = vmatpush1.bf16.msra.mxu0 0
        %2060 = vmatprep.subr.bf16.mxu0 0
        %2061 = vmatpush1.bf16.msra.mxu0 0
        %2062 = vmatprep.subr.bf16.mxu0 0
        %2063 = vmatpush1.bf16.msra.mxu0 0
        %2064 = vmatprep.subr.bf16.mxu0 0
        %2065 = vmatpush1.bf16.msra.mxu0 0
        %2066 = vmatprep.subr.bf16.mxu0 0
        %2067 = vmatpush1.bf16.msra.mxu0 0
        %2068 = vmatprep.subr.bf16.mxu0 0
        %2069 = vmatpush1.bf16.msra.mxu0 0
        %2070 = vmatprep.subr.bf16.mxu0 0
        %2071 = vmatpush1.bf16.msra.mxu0 0
        %2072 = vmatprep.subr.bf16.mxu0 0
        %2073 = vmatpush1.bf16.msra.mxu0 0
        %2074 = vmatprep.subr.bf16.mxu0 0
        %2075 = vmatpush1.bf16.msra.mxu0 0
        %2076 = vmatprep.subr.bf16.mxu0 0
        %2077 = vmatpush1.bf16.msra.mxu0 0
        %2078 = vmatprep.subr.bf16.mxu0 0
        %2079 = vmatpush1.bf16.msra.mxu0 0
        %2080 = vmatprep.subr.bf16.mxu0 0
        %2081 = vmatpush1.bf16.msra.mxu0 0
        %2082 = vmatprep.subr.bf16.mxu0 0
        %2083 = vmatpush1.bf16.msra.mxu0 0
        %2084 = vmatprep.mubr.bf16.mxu0 0
        %2085 = vmatmul.mubr.bf16.gmra.mrb[0].mxu0 %v2050
        %v2086 = vpop.f32.mrb[0].mxu0
        %v2087 = vadd.f32 %v2035, %v2086
        %v2088 = vpop.f32.mrb[0].mxu0
        %v2089 = vpop.f32.mrb[0].mxu0
        %v2090 = vadd.f32 %v2035, %v2089
        %v2091 = vpop.f32.mrb[0].mxu0
        %2092 = vdwg.mxu0
        %v2093 = vmax.f32 %v2087, 0.0
        %v2094 = vmax.f32 %v2090, 0.0
        %v2095 = vpack.c.bf16 %v2094, %v2093
        %v2096 = vld [vmem:[%s742] sm:$0xf]
        %v2097 = vld [vmem:[%s742 + $0x4] sm:$0xf]
        %v2098 = vld [vmem:[%s742 + $0x8] sm:$0xf]
        %v2099 = vld [vmem:[%s742 + $0xc] sm:$0xf]
        %v2100 = vld [vmem:[%s742 + $0x10] sm:$0xf]
        %v2101 = vld [vmem:[%s742 + $0x14] sm:$0xf]
        %v2102 = vld [vmem:[%s742 + $0x18] sm:$0xf]
        %v2103 = vld [vmem:[%s742 + $0x1c] sm:$0xf]
        %v2104 = vld [vmem:[%s745] sm:$0x1]
        %v2106 = vlaneseq
        %v2107 = vshrl.u32 %v2106, 7
        %v2108 = vsub.s32 0, %v2107
        %v2109 = vrot.slane %v2104, %v2108
        %v2119 = vunpack.c.l.b16 %v2096
        %v2120 = vunpack.c.l.b16 %v2097
        %v2121 = vunpack.c.l.b16 %v2098
        %v2122 = vunpack.c.l.b16 %v2099
        %v2123 = vunpack.c.l.b16 %v2100
        %v2124 = vunpack.c.l.b16 %v2101
        %v2125 = vunpack.c.l.b16 %v2102
        %v2126 = vunpack.c.l.b16 %v2103
        %v2127 = vpack.c.b16 %v2120, %v2119
        %v2128 = vpack.c.b16 %v2122, %v2121
        %v2129 = vpack.c.b16 %v2124, %v2123
        %v2130 = vpack.c.b16 %v2126, %v2125
        %vm2135 = vcmask 523264
        %v2137 = vsel %vm2135, %v2095, 0
        %2139 = vmatprep.subr.bf16.mxu0 0
        %2140 = vmatpush1.bf16.msra.mxu0 %v2127
        %2141 = vmatprep.subr.bf16.mxu0 0
        %2142 = vmatpush1.bf16.msra.mxu0 %v2128
        %2143 = vmatprep.subr.bf16.mxu0 0
        %2144 = vmatpush1.bf16.msra.mxu0 %v2129
        %2145 = vmatprep.subr.bf16.mxu0 0
        %2146 = vmatpush1.bf16.msra.mxu0 %v2130
        %2147 = vmatprep.subr.bf16.mxu0 0
        %2148 = vmatpush1.bf16.msra.mxu0 0
        %2149 = vmatprep.subr.bf16.mxu0 0
        %2150 = vmatpush1.bf16.msra.mxu0 0
        %2151 = vmatprep.subr.bf16.mxu0 0
        %2152 = vmatpush1.bf16.msra.mxu0 0
        %2153 = vmatprep.subr.bf16.mxu0 0
        %2154 = vmatpush1.bf16.msra.mxu0 0
        %2155 = vmatprep.subr.bf16.mxu0 0
        %2156 = vmatpush1.bf16.msra.mxu0 0
        %2157 = vmatprep.subr.bf16.mxu0 0
        %2158 = vmatpush1.bf16.msra.mxu0 0
        %2159 = vmatprep.subr.bf16.mxu0 0
        %2160 = vmatpush1.bf16.msra.mxu0 0
        %2161 = vmatprep.subr.bf16.mxu0 0
        %2162 = vmatpush1.bf16.msra.mxu0 0
        %2163 = vmatprep.subr.bf16.mxu0 0
        %2164 = vmatpush1.bf16.msra.mxu0 0
        %2165 = vmatprep.subr.bf16.mxu0 0
        %2166 = vmatpush1.bf16.msra.mxu0 0
        %2167 = vmatprep.subr.bf16.mxu0 0
        %2168 = vmatpush1.bf16.msra.mxu0 0
        %2169 = vmatprep.subr.bf16.mxu0 0
        %2170 = vmatpush1.bf16.msra.mxu0 0
        %2171 = vmatprep.mubr.bf16.mxu0 0
        %2172 = vmatmul.mubr.bf16.gmra.mrb[0].mxu0 %v2137
        %v2173 = vpop.f32.mrb[0].mxu0
        %v2174 = vadd.f32 %v2109, %v2173
        %v2175 = vpop.f32.mrb[0].mxu0
        %v2176 = vpop.f32.mrb[0].mxu0
        %v2177 = vadd.f32 %v2109, %v2176
        %v2178 = vpop.f32.mrb[0].mxu0
        %2179 = vdwg.mxu0
        %v2180 = vadd.f32 %v1979, %v2174
        %v2181 = vadd.f32 %v1980, %v2177
        %2182 = vst.msk [vmem:[#allocation2] sm:$0xff] %vm761, %v2180
        %2183 = vst.msk [vmem:[#allocation2 + $0x8] sm:$0xff] %vm761, %v2181
        %p2184 = scmp.eq.s32.totalorder %s34, 1
        // Predicated region
        $region93: #{transformer_forward.1} parent=87 // pred_check
          %p2185 = pneg %p2184
        $region94: #{transformer_forward.1} parent=87 // pred_check_branch
          %2187 = sbr.rel (%p2185) target = $region96
        $region95: #{transformer_forward.1} parent=87 // pred_region
          %v2188 = vld [vmem:[%s13] sm:$0x1]
          %v2189 = vld [vmem:[%s14] sm:$0x1]
          %v2190 = vsel %vm761, %v2180, 0.0
          %2191 = vadd.xlane.f32.xlu0 %v2190
          %v2192 = vpop.xlane.xlu0 %2191
          %v2193 = vsel %vm761, %v2181, 0.0
          %2194 = vadd.xlane.f32.xlu0 %v2193
          %v2195 = vpop.xlane.xlu0 %2194
          %v2196 = vmul.f32 %v2192, %v768
          %v2197 = vmul.f32 %v2195, %v768
          %v2198 = vsub.f32 %v2180, %v2196
          %v2199 = vsub.f32 %v2181, %v2197
          %v2200 = vmul.f32 %v2198, %v2198
          %v2201 = vmul.f32 %v2199, %v2199
          %v2202 = vsel %vm761, %v2200, 0.0
          %2203 = vadd.xlane.f32.xlu0 %v2202
          %v2204 = vpop.xlane.xlu0 %2203
          %v2205 = vsel %vm761, %v2201, 0.0
          %2206 = vadd.xlane.f32.xlu0 %v2205
          %v2207 = vpop.xlane.xlu0 %2206
          %v2208 = vmul.f32 %v2204, %v768
          %v2209 = vmul.f32 %v2207, %v768
          %v2210 = vadd.f32 %v2208, 1e-05
          %v2211 = vadd.f32 %v2209, 1e-05
          %v2212 = vrsqrt.pop %v2210
          %v2213 = vrsqrt.pop %v2211
          %v2214 = vmul.f32 %v2198, %v2212
          %v2215 = vmul.f32 %v2199, %v2213
          %v2217 = vlaneseq
          %v2218 = vshrl.u32 %v2217, 7
          %v2219 = vsub.s32 0, %v2218
          %v2220 = vrot.slane %v2188, %v2219
          %v2222 = vmul.f32 %v2214, %v2220
          %v2223 = vmul.f32 %v2215, %v2220
          %v2225 = vlaneseq
          %v2226 = vshrl.u32 %v2225, 7
          %v2227 = vsub.s32 0, %v2226
          %v2228 = vrot.slane %v2189, %v2227
          %v2230 = vadd.f32 %v2222, %v2228
          %v2231 = vadd.f32 %v2223, %v2228
          %v2232 = vpack.c.bf16 %v2231, %v2230
          %v2233 = vld [vmem:[%s15] sm:$0xf]
          %v2234 = vld [vmem:[%s15 + $0x4] sm:$0xf]
          %v2235 = vld [vmem:[%s15 + $0x8] sm:$0xf]
          %v2236 = vld [vmem:[%s15 + $0xc] sm:$0xf]
          %v2237 = vld [vmem:[%s16] sm:$0x1]
          %v2239 = vlaneseq
          %v2240 = vshrl.u32 %v2239, 7
          %v2241 = vsub.s32 0, %v2240
          %v2242 = vrot.slane %v2237, %v2241
          %v2248 = vunpack.c.l.b16 %v2233
          %v2249 = vunpack.c.l.b16 %v2234
          %v2250 = vunpack.c.l.b16 %v2235
          %v2251 = vunpack.c.l.b16 %v2236
          %v2252 = vpack.c.b16 %v2249, %v2248
          %v2253 = vpack.c.b16 %v2251, %v2250
          %v2257 = vsel %vm761, %v2232, 0
          %2259 = vmatprep.subr.bf16.mxu0 0
          %2260 = vmatpush1.bf16.msra.mxu0 %v2252
          %2261 = vmatprep.subr.bf16.mxu0 0
          %2262 = vmatpush1.bf16.msra.mxu0 %v2253
          %2263 = vmatprep.subr.bf16.mxu0 0
          %2264 = vmatpush1.bf16.msra.mxu0 0
          %2265 = vmatprep.subr.bf16.mxu0 0
          %2266 = vmatpush1.bf16.msra.mxu0 0
          %2267 = vmatprep.subr.bf16.mxu0 0
          %2268 = vmatpush1.bf16.msra.mxu0 0
          %2269 = vmatprep.subr.bf16.mxu0 0
          %2270 = vmatpush1.bf16.msra.mxu0 0
          %2271 = vmatprep.subr.bf16.mxu0 0
          %2272 = vmatpush1.bf16.msra.mxu0 0
          %2273 = vmatprep.subr.bf16.mxu0 0
          %2274 = vmatpush1.bf16.msra.mxu0 0
          %2275 = vmatprep.subr.bf16.mxu0 0
          %2276 = vmatpush1.bf16.msra.mxu0 0
          %2277 = vmatprep.subr.bf16.mxu0 0
          %2278 = vmatpush1.bf16.msra.mxu0 0
          %2279 = vmatprep.subr.bf16.mxu0 0
          %2280 = vmatpush1.bf16.msra.mxu0 0
          %2281 = vmatprep.subr.bf16.mxu0 0
          %2282 = vmatpush1.bf16.msra.mxu0 0
          %2283 = vmatprep.subr.bf16.mxu0 0
          %2284 = vmatpush1.bf16.msra.mxu0 0
          %2285 = vmatprep.subr.bf16.mxu0 0
          %2286 = vmatpush1.bf16.msra.mxu0 0
          %2287 = vmatprep.subr.bf16.mxu0 0
          %2288 = vmatpush1.bf16.msra.mxu0 0
          %2289 = vmatprep.subr.bf16.mxu0 0
          %2290 = vmatpush1.bf16.msra.mxu0 0
          %2291 = vmatprep.mubr.bf16.mxu0 0
          %2292 = vmatmul.mubr.bf16.gmra.mrb[0].mxu0 %v2257
          %v2293 = vpop.f32.mrb[0].mxu0
          %v2294 = vadd.f32 %v2242, %v2293
          %v2295 = vpop.f32.mrb[0].mxu0
          %v2296 = vpop.f32.mrb[0].mxu0
          %v2297 = vadd.f32 %v2242, %v2296
          %v2298 = vpop.f32.mrb[0].mxu0
          %2299 = vdwg.mxu0
          %2300 = vst [vmem:[#allocation3] sm:$0xff] %v2294
          %2301 = vst [vmem:[#allocation3 + $0x8] sm:$0xff] %v2297
        $region96: #{transformer_forward.1} parent=87 // pred_fallthru
          _
        // Predicated region
        $region97: #{transformer_forward.1} parent=87 // pred_check
          %p2302 = pneg %p481
        $region98: #{transformer_forward.1} parent=87 // pred_check_branch
          %2304 = sbr.rel (%p2302) target = $region100
        $region99: #{transformer_forward.1} parent=87 // pred_region
          %s2305 = smul.u32 2, %s33
          %s2307 = ssub.s32 256, 256
          %2308 = vsyncadd [#allocation4], %s2307
          %s2309 = smul.addr %s2305, 128
          %s2310 = scalar_lea.hbm %s17, %s2309
          %s2311 = sshll.u32 [#allocation3], 4
          %s2312 = int_to_ptr.vmem [resolvable:$true] %s2311
          %2317 = dma.vmem_to_hbm [thread:$0]  %s2312, 256, %s2310, [#allocation4], 128, 128, 8
        $region100: #{transformer_forward.1} parent=87 // pred_fallthru
          _
        // Predicated region
        $region101: #{transformer_forward.1} parent=87 // pred_check
          %p2318 = pneg %p481
        $region102: #{transformer_forward.1} parent=87 // pred_check_branch
          %2320 = sbr.rel (%p2318) target = $region104
        $region103: #{transformer_forward.1} parent=87 // pred_region
          %2321 = dma.done [#allocation4], 256
        $region104: #{transformer_forward.1} parent=87 // pred_fallthru
          _
      $region88: #{transformer_forward.1} parent=5 // pred_fallthru
        _
      %p2322 = scmp.le.s32.totalorder 2, %s24
      // Predicated region
      $region105: #{transformer_forward.1} parent=5 // pred_check
        %p2323 = pneg %p2322
      $region106: #{transformer_forward.1} parent=5 // pred_check_branch
        %2325 = sbr.rel (%p2323) target = $region108
      $region107: #{transformer_forward.1} parent=5 // pred_region
        %s2326 = ssub.s32 %s24, 2
      $region108: #{transformer_forward.1} parent=5 // pred_fallthru
        _
    $region6: #{transformer_forward.1} parent=1 // loop_footer
      %s28 = sadd.s32 1, %s24
    $region7: #{transformer_forward.1} parent=1 // loop_footer_branch
      %23 = sbr.rel target = $region3
    $region8: #{transformer_forward.1} parent=1 // loop_exit
      _
    %2327 = vsyncpa [#allocation4], 1
    %s2328 = scalar_lea.sflag [#allocation4], 1
    %2329 = vsyncpa %s2328, 1

</llo_original>
